<compile_context>
chip_gen: v7x
topology: tpu7x:2x2x1
jax: 0.10.0
libtpu: 0.0.40
codegen_flags: <defaults>
</compile_context>

<pallas_src>
import jax
import jax.numpy as jnp
from jax.experimental import pallas as pl
from jax.experimental.pallas import tpu as pltpu

HIDDEN = 32
NUM_LAYERS = 5   # 1 input layer + (NUM_LAYERS - 1) hidden layers, + output layer
LANE = 128


def pinn_kernel(pts_ref, w0_ref, b0_ref, wh_ref, bh_ref, wo_ref, bo_ref,
                out_ref):
    """One batch tile.  Batch sits on the 128-lane axis (lane-dense).

    pts_ref : (2G, TMG)   f32  packed points: rows 2g / 2g+1 = x / y of chunk g
    w0_ref  : (G*H, 2G)   mxu  block-diagonal first-layer weight
    b0_ref  : (G*H, 1)    f32
    wh_ref  : (L, G*H, G*H) mxu block-diagonal hidden weights
    bh_ref  : (L, G*H, 1) f32
    wo_ref  : (2G, G*H)   mxu  block-diagonal output weight
    bo_ref  : (2G, 1)     f32
    out_ref : (2G, TMG)   f32  rows 2g / 2g+1 = psi / p of chunk g
    """
    mxu_dt = w0_ref.dtype  # bf16 on the fast path, f32 on the exact path
    # First layer (K = 2G).
    # TODO(synk): this K=2 (per chunk) contraction could move to the VPU as two
    # broadcast-mul-adds to save one MXU weight push; modest win, kept on MXU.
    h = jnp.tanh(
        jnp.dot(w0_ref[...], pts_ref[...].astype(mxu_dt),
                preferred_element_type=jnp.float32) + b0_ref[...])
    # Hidden layers: static unroll so the next layer's MXU push overlaps the
    # previous layer's tanh (EUP) / bias-add (VPU).
    for l in range(wh_ref.shape[0]):
        h = jnp.tanh(
            jnp.dot(wh_ref[l], h.astype(mxu_dt),
                    preferred_element_type=jnp.float32) + bh_ref[l])
    # Output layer: (2G, G*H) @ (G*H, TMG) -> (2G, TMG), single lane-dense slab.
    out_ref[...] = (
        jnp.dot(wo_ref[...], h.astype(mxu_dt),
                preferred_element_type=jnp.float32) + bo_ref[...])


def init_params(key, num_layers=NUM_LAYERS, hidden=HIDDEN):
    """Deterministic init mimicking nn.Linear default (U(-1/sqrt(fan_in), ...))."""
    dims = [2] + [hidden] * num_layers + [2]
    params = []
    for i in range(len(dims) - 1):
        fan_in, fan_out = dims[i], dims[i + 1]
        key, kw, kb = jax.random.split(key, 3)
        bound = 1.0 / jnp.sqrt(fan_in)
        w = jax.random.uniform(kw, (fan_in, fan_out), jnp.float32, -bound, bound)
        b = jax.random.uniform(kb, (1, fan_out), jnp.float32, -bound, bound)
        params.append((w, b))
    return params


def _round_up(a, m):
    return ((a + m - 1) // m) * m


def _default_pack():
    """MXU-filling pack factor: 8 for 256x256 MXUs (v6e/v7x), else 4."""
    try:
        kind = jax.devices()[0].device_kind.lower()
    except Exception:
        return 4
    if "v6" in kind or "v7" in kind:
        return 8
    return 4


def pinn_forward(x, y, params, *, tm=8192, pack=None, mxu_dtype=jnp.bfloat16):
    """x, y: (N, 1) float32.  Returns (psi, p), each (N, 1) float32."""
    n = x.shape[0]
    h = HIDDEN
    g = _default_pack() if pack is None else pack

    # --- wrapper-side layout plumbing (cheap, one-time XLA ops) -------------
    # Build (2, N) directly from (N,1) reshapes (no physical transpose).
    points_t = jnp.concatenate([x.reshape(1, -1), y.reshape(1, -1)], axis=0)

    (w0, b0) = params[0]
    hidden_params = params[1:-1]
    (wo, bo) = params[-1]

    eye_g = jnp.eye(g, dtype=jnp.float32)
    w0_bd = jnp.kron(eye_g, w0.T).astype(mxu_dtype)                 # (G*H, 2G)
    b0_bd = jnp.tile(b0.reshape(-1, 1), (g, 1))                     # (G*H, 1)
    wh_bd = jnp.stack(
        [jnp.kron(eye_g, w.T) for (w, _) in hidden_params]).astype(mxu_dtype)
    bh_bd = jnp.stack(
        [jnp.tile(b.reshape(-1, 1), (g, 1)) for (_, b) in hidden_params])
    wo_bd = jnp.kron(eye_g, wo.T).astype(mxu_dtype)                 # (2G, G*H)
    bo_bd = jnp.tile(bo.reshape(-1, 1), (g, 1))                     # (2G, 1)

    # --- tile sizing ---------------------------------------------------------
    unit = g * LANE                              # tile granularity (TMG mult of 128)
    n_units = -(-n // unit)
    tm_units = max(1, min(tm // unit, n_units))
    if n_units >= 2:
        # Keep >= 2 grid steps so both v7x TensorCores get work on the
        # "parallel" axis.
        tm_units = min(tm_units, -(-n_units // 2))
    tm = tm_units * unit
    n_pad = _round_up(n, tm)
    n_tiles = n_pad // tm
    tmg = tm // g

    if n_pad != n:
        points_t = jnp.pad(points_t, ((0, 0), (0, n_pad - n)))

    # Pack G batch chunks onto the sublane axis:
    #   packed[2g + c, t*tmg + j] = points_t[c, t*tm + g*tmg + j]
    pts_packed = (points_t.reshape(2, n_tiles, g, tmg)
                  .transpose(2, 0, 1, 3)
                  .reshape(2 * g, n_tiles * tmg))

    weight_args = (w0_bd, b0_bd, wh_bd, bh_bd, wo_bd, bo_bd)

    in_specs = [pl.BlockSpec((2 * g, tmg), lambda i: (0, i))]   # points, batch-tiled
    for w in weight_args:                                       # full (untiled) blocks
        in_specs.append(pl.BlockSpec(w.shape, lambda i, nd=w.ndim: (0,) * nd))
    out_specs = pl.BlockSpec((2 * g, tmg), lambda i: (0, i))    # merged (psi; p) slab

    out_packed = pl.pallas_call(
        pinn_kernel,
        out_shape=jax.ShapeDtypeStruct((2 * g, n_tiles * tmg), jnp.float32),
        grid_spec=pltpu.PrefetchScalarGridSpec(
            num_scalar_prefetch=0,
            grid=(n_tiles,),
            in_specs=in_specs,
            out_specs=out_specs,
        ),
        compiler_params=pltpu.CompilerParams(
            dimension_semantics=("parallel",),
            vmem_limit_bytes=32 * 1024 * 1024),
    )(pts_packed, *weight_args)

    # Unpack (inverse of the packing above), drop padding, split psi / p.
    out_t = (out_packed.reshape(g, 2, n_tiles, tmg)
             .transpose(1, 2, 0, 3)
             .reshape(2, n_pad))
    psi = out_t[0, :n].reshape(n, 1)
    p = out_t[1, :n].reshape(n, 1)
    return psi, p


def pinn_ref(x, y, params):
    """Pure-JAX f32 reference for verification."""
    h = jnp.concatenate([x, y], axis=1)
    for i, (w, b) in enumerate(params):
        h = h @ w + b
        if i < len(params) - 1:
            h = jnp.tanh(h)
    return h[:, 0:1], h[:, 1:2]


if __name__ == "__main__":
    key = jax.random.PRNGKey(0)
    kp, kx, ky = jax.random.split(key, 3)

    # N deliberately NOT a multiple of the tile to exercise padding + packing.
    N = 500
    params = init_params(kp)
    x = jax.random.normal(kx, (N, 1), jnp.float32)
    y = jax.random.normal(ky, (N, 1), jnp.float32)

    psi_ref, p_ref = pinn_ref(x, y, params)

    # 1) Exact path (f32 at the MXU): validates block-diag packing / unpacking
    #    and the padding path bit-for-bit-ish against the reference.
    psi32, p32 = pinn_forward(x, y, params, tm=1024, mxu_dtype=jnp.float32)
    jax.block_until_ready((psi32, p32))
    assert psi32.shape == (N, 1) and p32.shape == (N, 1)
    assert jnp.allclose(psi32, psi_ref, atol=1e-5, rtol=1e-5)
    assert jnp.allclose(p32, p_ref, atol=1e-5, rtol=1e-5)

    # 2) Default fast path (bf16 dot operands, f32 accumulation / elementwise).
    psi, p = pinn_forward(x, y, params)
    jax.block_until_ready((psi, p))
    assert psi.shape == (N, 1) and p.shape == (N, 1)
    assert jnp.allclose(psi, psi_ref, atol=3e-2, rtol=3e-2)
    assert jnp.allclose(p, p_ref, atol=3e-2, rtol=3e-2)

    print("KERNEL_OK")
</pallas_src>

<mosaic_0001>
module attributes {stable_mosaic.version = 11 : i64} {
  func.func @pinn_kernel(%arg0: i32, %arg1: memref<8x128xf32, #tpu.memory_space<vmem>>, %arg2: memref<128x8xf32, #tpu.memory_space<vmem>>, %arg3: memref<128x1xf32, #tpu.memory_space<vmem>>, %arg4: memref<4x128x128xf32, #tpu.memory_space<vmem>>, %arg5: memref<4x128x1xf32, #tpu.memory_space<vmem>>, %arg6: memref<8x128xf32, #tpu.memory_space<vmem>>, %arg7: memref<8x1xf32, #tpu.memory_space<vmem>>, %arg8: memref<8x128xf32, #tpu.memory_space<vmem>>) attributes {dimension_semantics = [#tpu.dimension_semantics<parallel>], iteration_bounds = array<i64: 1>, scalar_prefetch = 0 : i64, scratch_operands = 0 : i64, tpu.core_type = #tpu.core_type<tc>, window_params = [{transform_indices = @transform_0, window_bounds = array<i64: 8, 128>}, {pipeline_mode = #tpu.pipeline_mode<synchronous>, transform_indices = @transform_1, window_bounds = array<i64: 128, 8>}, {pipeline_mode = #tpu.pipeline_mode<synchronous>, transform_indices = @transform_2, window_bounds = array<i64: 128, 1>}, {pipeline_mode = #tpu.pipeline_mode<synchronous>, transform_indices = @transform_3, window_bounds = array<i64: 4, 128, 128>}, {pipeline_mode = #tpu.pipeline_mode<synchronous>, transform_indices = @transform_4, window_bounds = array<i64: 4, 128, 1>}, {pipeline_mode = #tpu.pipeline_mode<synchronous>, transform_indices = @transform_5, window_bounds = array<i64: 8, 128>}, {pipeline_mode = #tpu.pipeline_mode<synchronous>, transform_indices = @transform_6, window_bounds = array<i64: 8, 1>}, {transform_indices = @transform_7, window_bounds = array<i64: 8, 128>}]} {
    %c0 = arith.constant 0 : index
    %c0_0 = arith.constant 0 : index
    %0 = vector.load %arg2[%c0, %c0_0] : memref<128x8xf32, #tpu.memory_space<vmem>>, vector<128x8xf32>
    %c0_1 = arith.constant 0 : index
    %c0_2 = arith.constant 0 : index
    %1 = vector.load %arg1[%c0_1, %c0_2] : memref<8x128xf32, #tpu.memory_space<vmem>>, vector<8x128xf32>
    %cst = arith.constant dense<0.000000e+00> : vector<128x128xf32>
    %2 = tpu.matmul %0, %1, %cst {dimension_numbers = #tpu.dot_dimension_numbers<[1], [0], [0], [1], [0, 0, 1, 1], [], []>} : vector<128x8xf32>, vector<8x128xf32>, vector<128x128xf32> -> vector<128x128xf32>
    %c0_3 = arith.constant 0 : index
    %c0_4 = arith.constant 0 : index
    %3 = vector.load %arg3[%c0_3, %c0_4] : memref<128x1xf32, #tpu.memory_space<vmem>>, vector<128x1xf32>
    %4 = vector.broadcast %3 : vector<128x1xf32> to vector<128x128xf32>
    %5 = arith.addf %2, %4 : vector<128x128xf32>
    %6 = math.tanh %5 : vector<128x128xf32>
    %c0_5 = arith.constant 0 : index
    %c0_6 = arith.constant 0 : index
    %c0_7 = arith.constant 0 : index
    %7 = vector.load %arg4[%c0_5, %c0_6, %c0_7] : memref<4x128x128xf32, #tpu.memory_space<vmem>>, vector<1x128x128xf32>
    %8 = vector.shape_cast %7 : vector<1x128x128xf32> to vector<128x128xf32>
    %cst_8 = arith.constant dense<0.000000e+00> : vector<128x128xf32>
    %9 = tpu.matmul %8, %6, %cst_8 {dimension_numbers = #tpu.dot_dimension_numbers<[1], [0], [0], [1], [0, 0, 1, 1], [], []>} : vector<128x128xf32>, vector<128x128xf32>, vector<128x128xf32> -> vector<128x128xf32>
    %c0_9 = arith.constant 0 : index
    %c0_10 = arith.constant 0 : index
    %c0_11 = arith.constant 0 : index
    %10 = vector.load %arg5[%c0_9, %c0_10, %c0_11] : memref<4x128x1xf32, #tpu.memory_space<vmem>>, vector<1x128x1xf32>
    %11 = vector.shape_cast %10 : vector<1x128x1xf32> to vector<128x1xf32>
    %12 = vector.broadcast %11 : vector<128x1xf32> to vector<128x128xf32>
    %13 = arith.addf %9, %12 : vector<128x128xf32>
    %14 = math.tanh %13 : vector<128x128xf32>
    %c1 = arith.constant 1 : index
    %c0_12 = arith.constant 0 : index
    %c0_13 = arith.constant 0 : index
    %15 = vector.load %arg4[%c1, %c0_12, %c0_13] : memref<4x128x128xf32, #tpu.memory_space<vmem>>, vector<1x128x128xf32>
    %16 = vector.shape_cast %15 : vector<1x128x128xf32> to vector<128x128xf32>
    %cst_14 = arith.constant dense<0.000000e+00> : vector<128x128xf32>
    %17 = tpu.matmul %16, %14, %cst_14 {dimension_numbers = #tpu.dot_dimension_numbers<[1], [0], [0], [1], [0, 0, 1, 1], [], []>} : vector<128x128xf32>, vector<128x128xf32>, vector<128x128xf32> -> vector<128x128xf32>
    %c1_15 = arith.constant 1 : index
    %c0_16 = arith.constant 0 : index
    %c0_17 = arith.constant 0 : index
    %18 = vector.load %arg5[%c1_15, %c0_16, %c0_17] : memref<4x128x1xf32, #tpu.memory_space<vmem>>, vector<1x128x1xf32>
    %19 = vector.shape_cast %18 : vector<1x128x1xf32> to vector<128x1xf32>
    %20 = vector.broadcast %19 : vector<128x1xf32> to vector<128x128xf32>
    %21 = arith.addf %17, %20 : vector<128x128xf32>
    %22 = math.tanh %21 : vector<128x128xf32>
    %c2 = arith.constant 2 : index
    %c0_18 = arith.constant 0 : index
    %c0_19 = arith.constant 0 : index
    %23 = vector.load %arg4[%c2, %c0_18, %c0_19] : memref<4x128x128xf32, #tpu.memory_space<vmem>>, vector<1x128x128xf32>
    %24 = vector.shape_cast %23 : vector<1x128x128xf32> to vector<128x128xf32>
    %cst_20 = arith.constant dense<0.000000e+00> : vector<128x128xf32>
    %25 = tpu.matmul %24, %22, %cst_20 {dimension_numbers = #tpu.dot_dimension_numbers<[1], [0], [0], [1], [0, 0, 1, 1], [], []>} : vector<128x128xf32>, vector<128x128xf32>, vector<128x128xf32> -> vector<128x128xf32>
    %c2_21 = arith.constant 2 : index
    %c0_22 = arith.constant 0 : index
    %c0_23 = arith.constant 0 : index
    %26 = vector.load %arg5[%c2_21, %c0_22, %c0_23] : memref<4x128x1xf32, #tpu.memory_space<vmem>>, vector<1x128x1xf32>
    %27 = vector.shape_cast %26 : vector<1x128x1xf32> to vector<128x1xf32>
    %28 = vector.broadcast %27 : vector<128x1xf32> to vector<128x128xf32>
    %29 = arith.addf %25, %28 : vector<128x128xf32>
    %30 = math.tanh %29 : vector<128x128xf32>
    %c3 = arith.constant 3 : index
    %c0_24 = arith.constant 0 : index
    %c0_25 = arith.constant 0 : index
    %31 = vector.load %arg4[%c3, %c0_24, %c0_25] : memref<4x128x128xf32, #tpu.memory_space<vmem>>, vector<1x128x128xf32>
    %32 = vector.shape_cast %31 : vector<1x128x128xf32> to vector<128x128xf32>
    %cst_26 = arith.constant dense<0.000000e+00> : vector<128x128xf32>
    %33 = tpu.matmul %32, %30, %cst_26 {dimension_numbers = #tpu.dot_dimension_numbers<[1], [0], [0], [1], [0, 0, 1, 1], [], []>} : vector<128x128xf32>, vector<128x128xf32>, vector<128x128xf32> -> vector<128x128xf32>
    %c3_27 = arith.constant 3 : index
    %c0_28 = arith.constant 0 : index
    %c0_29 = arith.constant 0 : index
    %34 = vector.load %arg5[%c3_27, %c0_28, %c0_29] : memref<4x128x1xf32, #tpu.memory_space<vmem>>, vector<1x128x1xf32>
    %35 = vector.shape_cast %34 : vector<1x128x1xf32> to vector<128x1xf32>
    %36 = vector.broadcast %35 : vector<128x1xf32> to vector<128x128xf32>
    %37 = arith.addf %33, %36 : vector<128x128xf32>
    %38 = math.tanh %37 : vector<128x128xf32>
    %c0_30 = arith.constant 0 : index
    %c0_31 = arith.constant 0 : index
    %39 = vector.load %arg6[%c0_30, %c0_31] : memref<8x128xf32, #tpu.memory_space<vmem>>, vector<8x128xf32>
    %cst_32 = arith.constant dense<0.000000e+00> : vector<8x128xf32>
    %40 = tpu.matmul %39, %38, %cst_32 {dimension_numbers = #tpu.dot_dimension_numbers<[1], [0], [0], [1], [0, 0, 1, 1], [], []>} : vector<8x128xf32>, vector<128x128xf32>, vector<8x128xf32> -> vector<8x128xf32>
    %c0_33 = arith.constant 0 : index
    %c0_34 = arith.constant 0 : index
    %41 = vector.load %arg7[%c0_33, %c0_34] : memref<8x1xf32, #tpu.memory_space<vmem>>, vector<8x1xf32>
    %42 = vector.broadcast %41 : vector<8x1xf32> to vector<8x128xf32>
    %43 = arith.addf %40, %42 : vector<8x128xf32>
    %c0_35 = arith.constant 0 : index
    %c0_36 = arith.constant 0 : index
    %44 = vector.load %arg8[%c0_35, %c0_36] : memref<8x128xf32, #tpu.memory_space<vmem>>, vector<8x128xf32>
    tpu.vector_store %arg8[%c0_35, %c0_36], %43 {strides = array<i32>} : memref<8x128xf32, #tpu.memory_space<vmem>>, vector<8x128xf32>,
    return
  }
  func.func @transform_0(%arg0: i32) -> (i32, i32) {
    %c0_i32 = arith.constant 0 : i32
    %c0_i32_0 = arith.constant 0 : i32
    return %c0_i32, %arg0 : i32, i32
  }
  func.func @transform_1(%arg0: i32) -> (i32, i32) {
    %c0_i32 = arith.constant 0 : i32
    %c0_i32_0 = arith.constant 0 : i32
    %c0_i32_1 = arith.constant 0 : i32
    return %c0_i32, %c0_i32_0 : i32, i32
  }
  func.func @transform_2(%arg0: i32) -> (i32, i32) {
    %c0_i32 = arith.constant 0 : i32
    %c0_i32_0 = arith.constant 0 : i32
    %c0_i32_1 = arith.constant 0 : i32
    return %c0_i32, %c0_i32_0 : i32, i32
  }
  func.func @transform_3(%arg0: i32) -> (i32, i32, i32) {
    %c0_i32 = arith.constant 0 : i32
    %c0_i32_0 = arith.constant 0 : i32
    %c0_i32_1 = arith.constant 0 : i32
    %c0_i32_2 = arith.constant 0 : i32
    return %c0_i32, %c0_i32_0, %c0_i32_1 : i32, i32, i32
  }
  func.func @transform_4(%arg0: i32) -> (i32, i32, i32) {
    %c0_i32 = arith.constant 0 : i32
    %c0_i32_0 = arith.constant 0 : i32
    %c0_i32_1 = arith.constant 0 : i32
    %c0_i32_2 = arith.constant 0 : i32
    return %c0_i32, %c0_i32_0, %c0_i32_1 : i32, i32, i32
  }
  func.func @transform_5(%arg0: i32) -> (i32, i32) {
    %c0_i32 = arith.constant 0 : i32
    %c0_i32_0 = arith.constant 0 : i32
    %c0_i32_1 = arith.constant 0 : i32
    return %c0_i32, %c0_i32_0 : i32, i32
  }
  func.func @transform_6(%arg0: i32) -> (i32, i32) {
    %c0_i32 = arith.constant 0 : i32
    %c0_i32_0 = arith.constant 0 : i32
    %c0_i32_1 = arith.constant 0 : i32
    return %c0_i32, %c0_i32_0 : i32, i32
  }
  func.func @transform_7(%arg0: i32) -> (i32, i32) {
    %c0_i32 = arith.constant 0 : i32
    %c0_i32_0 = arith.constant 0 : i32
    return %c0_i32, %arg0 : i32, i32
  }
}

</mosaic_0001>

<llo_original>
// kernel: tpu_custom_call.1
$region0: #{tpu_custom_call.1}
  #allocation0 [shape = 'u32[]', space=smem, size = 0x4, offset = 0x4, fixed_abs, tag = 'smem constant byte address 0x4 - core index']
  #allocation1 [shape = 'u32[144,128]{1,0:T(1,128)}', space=vmem, size = 0x12000, scoped, tag = 'internal scratch']
  %s0 = inlined_call_operand.vmem [shape: f32[8,128], index: 0, kind: input, shape index: {}]
  %s1 = inlined_call_operand.vmem [shape: f32[128,8], index: 1, kind: input, shape index: {}]
  %s2 = inlined_call_operand.vmem [shape: f32[128,1], index: 2, kind: input, shape index: {}]
  %s3 = inlined_call_operand.vmem [shape: f32[4,128,128], index: 3, kind: input, shape index: {}]
  %s4 = inlined_call_operand.vmem [shape: f32[4,128,1], index: 4, kind: input, shape index: {}]
  %s5 = inlined_call_operand.vmem [shape: f32[8,128], index: 5, kind: input, shape index: {}]
  %s6 = inlined_call_operand.vmem [shape: f32[8,1], index: 6, kind: input, shape index: {}]
  %s7 = inlined_call_operand.hbm [shape: f32[8,128], index: 7, kind: output, shape index: {}]
  %s8 = sld [smem:[#allocation0]]
  $region38: #{tpu_custom_call.1} parent=0
    _
  %s10 = ssub.s32 1, %s8
  %s11 = scalar_select 0, %s10, %s8
  $region1: #{tpu_custom_call.1} parent=0
    #allocation2 [shape = 'u8[4096]{0}', space=vmem, size = 0x1000, scoped, tag = 'output window, operand 0, single buffered']
    #allocation3 [shape = 's32[1]{0}', space=sflag, size = 0x4, scoped, tag = 'scoped memory for tpu_custom_call.1']
    %12 = vsyncpa [#allocation3], 0
    // Predicated region
    $region2: #{tpu_custom_call.1} parent=1 // pred_check
      _
    $region3: #{tpu_custom_call.1} parent=1 // pred_check_branch
      %14 = sbr.rel (0) target = $region5
    $region4: #{tpu_custom_call.1} parent=1 // pred_region
      _
    $region5: #{tpu_custom_call.1} parent=1 // pred_fallthru
      _
    // Predicated region
    $region6: #{tpu_custom_call.1} parent=1 // pred_check
      _
    $region7: #{tpu_custom_call.1} parent=1 // pred_check_branch
      %16 = sbr.rel (0) target = $region9
    $region8: #{tpu_custom_call.1} parent=1 // pred_region
      _
    $region9: #{tpu_custom_call.1} parent=1 // pred_fallthru
      _
    // Predicated region
    $region10: #{tpu_custom_call.1} parent=1 // pred_check
      _
    $region11: #{tpu_custom_call.1} parent=1 // pred_check_branch
      %18 = sbr.rel (0) target = $region13
    $region12: #{tpu_custom_call.1} parent=1 // pred_region
      _
    $region13: #{tpu_custom_call.1} parent=1 // pred_fallthru
      _
    // Predicated region
    $region14: #{tpu_custom_call.1} parent=1 // pred_check
      _
    $region15: #{tpu_custom_call.1} parent=1 // pred_check_branch
      %20 = sbr.rel (0) target = $region17
    $region16: #{tpu_custom_call.1} parent=1 // pred_region
      _
    $region17: #{tpu_custom_call.1} parent=1 // pred_fallthru
      _
    // Predicated region
    $region18: #{tpu_custom_call.1} parent=1 // pred_check
      _
    $region19: #{tpu_custom_call.1} parent=1 // pred_check_branch
      %22 = sbr.rel (0) target = $region21
    $region20: #{tpu_custom_call.1} parent=1 // pred_region
      _
    $region21: #{tpu_custom_call.1} parent=1 // pred_fallthru
      _
    // Predicated region
    $region22: #{tpu_custom_call.1} parent=1 // pred_check
      _
    $region23: #{tpu_custom_call.1} parent=1 // pred_check_branch
      %24 = sbr.rel (0) target = $region25
    $region24: #{tpu_custom_call.1} parent=1 // pred_region
      _
    $region25: #{tpu_custom_call.1} parent=1 // pred_fallthru
      _
    // Predicated region
    $region26: #{tpu_custom_call.1} parent=1 // pred_check
      _
    $region27: #{tpu_custom_call.1} parent=1 // pred_check_branch
      %26 = sbr.rel (0) target = $region29
    $region28: #{tpu_custom_call.1} parent=1 // pred_region
      _
    $region29: #{tpu_custom_call.1} parent=1 // pred_fallthru
      _
    %v27 = vld [vmem:[%s1] sm:$0xff]
    %v28 = vld [vmem:[%s1 + $0x8] sm:$0xff]
    %v29 = vld [vmem:[%s1 + $0x10] sm:$0xff]
    %v30 = vld [vmem:[%s1 + $0x18] sm:$0xff]
    %v31 = vld [vmem:[%s1 + $0x20] sm:$0xff]
    %v32 = vld [vmem:[%s1 + $0x28] sm:$0xff]
    %v33 = vld [vmem:[%s1 + $0x30] sm:$0xff]
    %v34 = vld [vmem:[%s1 + $0x38] sm:$0xff]
    %v35 = vld [vmem:[%s1 + $0x40] sm:$0xff]
    %v36 = vld [vmem:[%s1 + $0x48] sm:$0xff]
    %v37 = vld [vmem:[%s1 + $0x50] sm:$0xff]
    %v38 = vld [vmem:[%s1 + $0x58] sm:$0xff]
    %v39 = vld [vmem:[%s1 + $0x60] sm:$0xff]
    %v40 = vld [vmem:[%s1 + $0x68] sm:$0xff]
    %v41 = vld [vmem:[%s1 + $0x70] sm:$0xff]
    %v42 = vld [vmem:[%s1 + $0x78] sm:$0xff]
    %v43 = vld [vmem:[%s0] sm:$0xff]
    %v44 = vld [vmem:[%s2] sm:$0xff]
    %v45 = vld [vmem:[%s2 + $0x8] sm:$0xff]
    %v46 = vld [vmem:[%s2 + $0x10] sm:$0xff]
    %v47 = vld [vmem:[%s2 + $0x18] sm:$0xff]
    %v48 = vld [vmem:[%s2 + $0x20] sm:$0xff]
    %v49 = vld [vmem:[%s2 + $0x28] sm:$0xff]
    %v50 = vld [vmem:[%s2 + $0x30] sm:$0xff]
    %v51 = vld [vmem:[%s2 + $0x38] sm:$0xff]
    %v52 = vld [vmem:[%s2 + $0x40] sm:$0xff]
    %v53 = vld [vmem:[%s2 + $0x48] sm:$0xff]
    %v54 = vld [vmem:[%s2 + $0x50] sm:$0xff]
    %v55 = vld [vmem:[%s2 + $0x58] sm:$0xff]
    %v56 = vld [vmem:[%s2 + $0x60] sm:$0xff]
    %v57 = vld [vmem:[%s2 + $0x68] sm:$0xff]
    %v58 = vld [vmem:[%s2 + $0x70] sm:$0xff]
    %v59 = vld [vmem:[%s2 + $0x78] sm:$0xff]
    %61 = vset.pattern.permute.xlu0 0
    %62 = vperm.xlu0 %61, %v44
    %v63 = vpop.permute.xlu0 %62
    %66 = vset.pattern.permute.xlu0 0
    %67 = vperm.xlu0 %66, %v45
    %v68 = vpop.permute.xlu0 %67
    %71 = vset.pattern.permute.xlu0 0
    %72 = vperm.xlu0 %71, %v46
    %v73 = vpop.permute.xlu0 %72
    %76 = vset.pattern.permute.xlu0 0
    %77 = vperm.xlu0 %76, %v47
    %v78 = vpop.permute.xlu0 %77
    %81 = vset.pattern.permute.xlu0 0
    %82 = vperm.xlu0 %81, %v48
    %v83 = vpop.permute.xlu0 %82
    %86 = vset.pattern.permute.xlu0 0
    %87 = vperm.xlu0 %86, %v49
    %v88 = vpop.permute.xlu0 %87
    %91 = vset.pattern.permute.xlu0 0
    %92 = vperm.xlu0 %91, %v50
    %v93 = vpop.permute.xlu0 %92
    %96 = vset.pattern.permute.xlu0 0
    %97 = vperm.xlu0 %96, %v51
    %v98 = vpop.permute.xlu0 %97
    %101 = vset.pattern.permute.xlu0 0
    %102 = vperm.xlu0 %101, %v52
    %v103 = vpop.permute.xlu0 %102
    %106 = vset.pattern.permute.xlu0 0
    %107 = vperm.xlu0 %106, %v53
    %v108 = vpop.permute.xlu0 %107
    %111 = vset.pattern.permute.xlu0 0
    %112 = vperm.xlu0 %111, %v54
    %v113 = vpop.permute.xlu0 %112
    %116 = vset.pattern.permute.xlu0 0
    %117 = vperm.xlu0 %116, %v55
    %v118 = vpop.permute.xlu0 %117
    %121 = vset.pattern.permute.xlu0 0
    %122 = vperm.xlu0 %121, %v56
    %v123 = vpop.permute.xlu0 %122
    %126 = vset.pattern.permute.xlu0 0
    %127 = vperm.xlu0 %126, %v57
    %v128 = vpop.permute.xlu0 %127
    %131 = vset.pattern.permute.xlu0 0
    %132 = vperm.xlu0 %131, %v58
    %v133 = vpop.permute.xlu0 %132
    %136 = vset.pattern.permute.xlu0 0
    %137 = vperm.xlu0 %136, %v59
    %v138 = vpop.permute.xlu0 %137
    %vm140 = vcmask 64512
    %v142 = vsel %vm140, %v27, 0
    %v145 = vsel %vm140, %v28, 0
    %v148 = vsel %vm140, %v29, 0
    %v151 = vsel %vm140, %v30, 0
    %v154 = vsel %vm140, %v31, 0
    %v157 = vsel %vm140, %v32, 0
    %v160 = vsel %vm140, %v33, 0
    %v163 = vsel %vm140, %v34, 0
    %v166 = vsel %vm140, %v35, 0
    %v169 = vsel %vm140, %v36, 0
    %v172 = vsel %vm140, %v37, 0
    %v175 = vsel %vm140, %v38, 0
    %v178 = vsel %vm140, %v39, 0
    %v181 = vsel %vm140, %v40, 0
    %v184 = vsel %vm140, %v41, 0
    %v187 = vsel %vm140, %v42, 0
    %189 = vmatprep.subr.mxu0 0.0
    %190 = vmatpush1.msra.mxu0 %v43
    %191 = vmatprep.subr.mxu0 0.0
    %192 = vmatpush1.msra.mxu0 0.0
    %193 = vmatprep.subr.mxu0 0.0
    %194 = vmatpush1.msra.mxu0 0.0
    %195 = vmatprep.subr.mxu0 0.0
    %196 = vmatpush1.msra.mxu0 0.0
    %197 = vmatprep.subr.mxu0 0.0
    %198 = vmatpush1.msra.mxu0 0.0
    %199 = vmatprep.subr.mxu0 0.0
    %200 = vmatpush1.msra.mxu0 0.0
    %201 = vmatprep.subr.mxu0 0.0
    %202 = vmatpush1.msra.mxu0 0.0
    %203 = vmatprep.subr.mxu0 0.0
    %204 = vmatpush1.msra.mxu0 0.0
    %205 = vmatprep.subr.mxu0 0.0
    %206 = vmatpush1.msra.mxu0 0.0
    %207 = vmatprep.subr.mxu0 0.0
    %208 = vmatpush1.msra.mxu0 0.0
    %209 = vmatprep.subr.mxu0 0.0
    %210 = vmatpush1.msra.mxu0 0.0
    %211 = vmatprep.subr.mxu0 0.0
    %212 = vmatpush1.msra.mxu0 0.0
    %213 = vmatprep.subr.mxu0 0.0
    %214 = vmatpush1.msra.mxu0 0.0
    %215 = vmatprep.subr.mxu0 0.0
    %216 = vmatpush1.msra.mxu0 0.0
    %217 = vmatprep.subr.mxu0 0.0
    %218 = vmatpush1.msra.mxu0 0.0
    %219 = vmatprep.subr.mxu0 0.0
    %220 = vmatpush1.msra.mxu0 0.0
    %221 = vmatprep.subr.mxu0 0.0
    %222 = vmatpush1.msra.mxu0 0.0
    %223 = vmatprep.subr.mxu0 0.0
    %224 = vmatpush1.msra.mxu0 0.0
    %225 = vmatprep.subr.mxu0 0.0
    %226 = vmatpush1.msra.mxu0 0.0
    %227 = vmatprep.subr.mxu0 0.0
    %228 = vmatpush1.msra.mxu0 0.0
    %229 = vmatprep.subr.mxu0 0.0
    %230 = vmatpush1.msra.mxu0 0.0
    %231 = vmatprep.subr.mxu0 0.0
    %232 = vmatpush1.msra.mxu0 0.0
    %233 = vmatprep.subr.mxu0 0.0
    %234 = vmatpush1.msra.mxu0 0.0
    %235 = vmatprep.subr.mxu0 0.0
    %236 = vmatpush1.msra.mxu0 0.0
    %237 = vmatprep.subr.mxu0 0.0
    %238 = vmatpush1.msra.mxu0 0.0
    %239 = vmatprep.subr.mxu0 0.0
    %240 = vmatpush1.msra.mxu0 0.0
    %241 = vmatprep.subr.mxu0 0.0
    %242 = vmatpush1.msra.mxu0 0.0
    %243 = vmatprep.subr.mxu0 0.0
    %244 = vmatpush1.msra.mxu0 0.0
    %245 = vmatprep.subr.mxu0 0.0
    %246 = vmatpush1.msra.mxu0 0.0
    %247 = vmatprep.subr.mxu0 0.0
    %248 = vmatpush1.msra.mxu0 0.0
    %249 = vmatprep.subr.mxu0 0.0
    %250 = vmatpush1.msra.mxu0 0.0
    %251 = vmatprep.subr.mxu0 0.0
    %252 = vmatpush1.msra.mxu0 0.0
    %253 = vmatprep.mubr.f32.mxu0 0.0
    %254 = vmatmul.mubr.f32.gmra.mrb[0].mxu0 %v142
    %v255 = vpop.f32.mrb[0].mxu0
    %v256 = vadd.f32 %v63, %v255
    %v257 = vpop.f32.mrb[0].mxu0
    %258 = vmatprep.mubr.f32.mxu0 0.0
    %259 = vmatmul.mubr.f32.gmra.mrb[0].mxu0 %v145
    %v260 = vpop.f32.mrb[0].mxu0
    %v261 = vadd.f32 %v68, %v260
    %v262 = vpop.f32.mrb[0].mxu0
    %263 = vmatprep.mubr.f32.mxu0 0.0
    %264 = vmatmul.mubr.f32.gmra.mrb[0].mxu0 %v148
    %v265 = vpop.f32.mrb[0].mxu0
    %v266 = vadd.f32 %v73, %v265
    %v267 = vpop.f32.mrb[0].mxu0
    %268 = vmatprep.mubr.f32.mxu0 0.0
    %269 = vmatmul.mubr.f32.gmra.mrb[0].mxu0 %v151
    %v270 = vpop.f32.mrb[0].mxu0
    %v271 = vadd.f32 %v78, %v270
    %v272 = vpop.f32.mrb[0].mxu0
    %273 = vmatprep.mubr.f32.mxu0 0.0
    %274 = vmatmul.mubr.f32.gmra.mrb[0].mxu0 %v154
    %v275 = vpop.f32.mrb[0].mxu0
    %v276 = vadd.f32 %v83, %v275
    %v277 = vpop.f32.mrb[0].mxu0
    %278 = vmatprep.mubr.f32.mxu0 0.0
    %279 = vmatmul.mubr.f32.gmra.mrb[0].mxu0 %v157
    %v280 = vpop.f32.mrb[0].mxu0
    %v281 = vadd.f32 %v88, %v280
    %v282 = vpop.f32.mrb[0].mxu0
    %283 = vmatprep.mubr.f32.mxu0 0.0
    %284 = vmatmul.mubr.f32.gmra.mrb[0].mxu0 %v160
    %v285 = vpop.f32.mrb[0].mxu0
    %v286 = vadd.f32 %v93, %v285
    %v287 = vpop.f32.mrb[0].mxu0
    %288 = vmatprep.mubr.f32.mxu0 0.0
    %289 = vmatmul.mubr.f32.gmra.mrb[0].mxu0 %v163
    %v290 = vpop.f32.mrb[0].mxu0
    %v291 = vadd.f32 %v98, %v290
    %v292 = vpop.f32.mrb[0].mxu0
    %293 = vmatprep.mubr.f32.mxu0 0.0
    %294 = vmatmul.mubr.f32.gmra.mrb[0].mxu0 %v166
    %v295 = vpop.f32.mrb[0].mxu0
    %v296 = vadd.f32 %v103, %v295
    %v297 = vpop.f32.mrb[0].mxu0
    %298 = vmatprep.mubr.f32.mxu0 0.0
    %299 = vmatmul.mubr.f32.gmra.mrb[0].mxu0 %v169
    %v300 = vpop.f32.mrb[0].mxu0
    %v301 = vadd.f32 %v108, %v300
    %v302 = vpop.f32.mrb[0].mxu0
    %303 = vmatprep.mubr.f32.mxu0 0.0
    %304 = vmatmul.mubr.f32.gmra.mrb[0].mxu0 %v172
    %v305 = vpop.f32.mrb[0].mxu0
    %v306 = vadd.f32 %v113, %v305
    %v307 = vpop.f32.mrb[0].mxu0
    %308 = vmatprep.mubr.f32.mxu0 0.0
    %309 = vmatmul.mubr.f32.gmra.mrb[0].mxu0 %v175
    %v310 = vpop.f32.mrb[0].mxu0
    %v311 = vadd.f32 %v118, %v310
    %v312 = vpop.f32.mrb[0].mxu0
    %313 = vmatprep.mubr.f32.mxu0 0.0
    %314 = vmatmul.mubr.f32.gmra.mrb[0].mxu0 %v178
    %v315 = vpop.f32.mrb[0].mxu0
    %v316 = vadd.f32 %v123, %v315
    %v317 = vpop.f32.mrb[0].mxu0
    %318 = vmatprep.mubr.f32.mxu0 0.0
    %319 = vmatmul.mubr.f32.gmra.mrb[0].mxu0 %v181
    %v320 = vpop.f32.mrb[0].mxu0
    %v321 = vadd.f32 %v128, %v320
    %v322 = vpop.f32.mrb[0].mxu0
    %323 = vmatprep.mubr.f32.mxu0 0.0
    %324 = vmatmul.mubr.f32.gmra.mrb[0].mxu0 %v184
    %v325 = vpop.f32.mrb[0].mxu0
    %v326 = vadd.f32 %v133, %v325
    %v327 = vpop.f32.mrb[0].mxu0
    %328 = vmatprep.mubr.f32.mxu0 0.0
    %329 = vmatmul.mubr.f32.gmra.mrb[0].mxu0 %v187
    %v330 = vpop.f32.mrb[0].mxu0
    %v331 = vadd.f32 %v138, %v330
    %v332 = vpop.f32.mrb[0].mxu0
    %333 = vdwg.mxu0
    %v334 = vtanh.pop %v256
    %v335 = vtanh.pop %v261
    %v336 = vtanh.pop %v266
    %v337 = vtanh.pop %v271
    %v338 = vtanh.pop %v276
    %v339 = vtanh.pop %v281
    %v340 = vtanh.pop %v286
    %v341 = vtanh.pop %v291
    %v342 = vtanh.pop %v296
    %v343 = vtanh.pop %v301
    %v344 = vtanh.pop %v306
    %v345 = vtanh.pop %v311
    %v346 = vtanh.pop %v316
    %v347 = vtanh.pop %v321
    %v348 = vtanh.pop %v326
    %v349 = vtanh.pop %v331
    %v350 = vld [vmem:[%s3] sm:$0xff]
    %v351 = vld [vmem:[%s3 + $0x8] sm:$0xff]
    %v352 = vld [vmem:[%s3 + $0x10] sm:$0xff]
    %v353 = vld [vmem:[%s3 + $0x18] sm:$0xff]
    %v354 = vld [vmem:[%s3 + $0x20] sm:$0xff]
    %v355 = vld [vmem:[%s3 + $0x28] sm:$0xff]
    %v356 = vld [vmem:[%s3 + $0x30] sm:$0xff]
    %v357 = vld [vmem:[%s3 + $0x38] sm:$0xff]
    %v358 = vld [vmem:[%s3 + $0x40] sm:$0xff]
    %v359 = vld [vmem:[%s3 + $0x48] sm:$0xff]
    %v360 = vld [vmem:[%s3 + $0x50] sm:$0xff]
    %v361 = vld [vmem:[%s3 + $0x58] sm:$0xff]
    %v362 = vld [vmem:[%s3 + $0x60] sm:$0xff]
    %v363 = vld [vmem:[%s3 + $0x68] sm:$0xff]
    %v364 = vld [vmem:[%s3 + $0x70] sm:$0xff]
    %v365 = vld [vmem:[%s3 + $0x78] sm:$0xff]
    %v366 = vld [vmem:[%s4] sm:$0xff]
    %v367 = vld [vmem:[%s4 + $0x8] sm:$0xff]
    %v368 = vld [vmem:[%s4 + $0x10] sm:$0xff]
    %v369 = vld [vmem:[%s4 + $0x18] sm:$0xff]
    %v370 = vld [vmem:[%s4 + $0x20] sm:$0xff]
    %v371 = vld [vmem:[%s4 + $0x28] sm:$0xff]
    %v372 = vld [vmem:[%s4 + $0x30] sm:$0xff]
    %v373 = vld [vmem:[%s4 + $0x38] sm:$0xff]
    %v374 = vld [vmem:[%s4 + $0x40] sm:$0xff]
    %v375 = vld [vmem:[%s4 + $0x48] sm:$0xff]
    %v376 = vld [vmem:[%s4 + $0x50] sm:$0xff]
    %v377 = vld [vmem:[%s4 + $0x58] sm:$0xff]
    %v378 = vld [vmem:[%s4 + $0x60] sm:$0xff]
    %v379 = vld [vmem:[%s4 + $0x68] sm:$0xff]
    %v380 = vld [vmem:[%s4 + $0x70] sm:$0xff]
    %v381 = vld [vmem:[%s4 + $0x78] sm:$0xff]
    %383 = vset.pattern.permute.xlu0 0
    %384 = vperm.xlu0 %383, %v366
    %v385 = vpop.permute.xlu0 %384
    %388 = vset.pattern.permute.xlu0 0
    %389 = vperm.xlu0 %388, %v367
    %v390 = vpop.permute.xlu0 %389
    %393 = vset.pattern.permute.xlu0 0
    %394 = vperm.xlu0 %393, %v368
    %v395 = vpop.permute.xlu0 %394
    %398 = vset.pattern.permute.xlu0 0
    %399 = vperm.xlu0 %398, %v369
    %v400 = vpop.permute.xlu0 %399
    %403 = vset.pattern.permute.xlu0 0
    %404 = vperm.xlu0 %403, %v370
    %v405 = vpop.permute.xlu0 %404
    %408 = vset.pattern.permute.xlu0 0
    %409 = vperm.xlu0 %408, %v371
    %v410 = vpop.permute.xlu0 %409
    %413 = vset.pattern.permute.xlu0 0
    %414 = vperm.xlu0 %413, %v372
    %v415 = vpop.permute.xlu0 %414
    %418 = vset.pattern.permute.xlu0 0
    %419 = vperm.xlu0 %418, %v373
    %v420 = vpop.permute.xlu0 %419
    %423 = vset.pattern.permute.xlu0 0
    %424 = vperm.xlu0 %423, %v374
    %v425 = vpop.permute.xlu0 %424
    %428 = vset.pattern.permute.xlu0 0
    %429 = vperm.xlu0 %428, %v375
    %v430 = vpop.permute.xlu0 %429
    %433 = vset.pattern.permute.xlu0 0
    %434 = vperm.xlu0 %433, %v376
    %v435 = vpop.permute.xlu0 %434
    %438 = vset.pattern.permute.xlu0 0
    %439 = vperm.xlu0 %438, %v377
    %v440 = vpop.permute.xlu0 %439
    %443 = vset.pattern.permute.xlu0 0
    %444 = vperm.xlu0 %443, %v378
    %v445 = vpop.permute.xlu0 %444
    %448 = vset.pattern.permute.xlu0 0
    %449 = vperm.xlu0 %448, %v379
    %v450 = vpop.permute.xlu0 %449
    %453 = vset.pattern.permute.xlu0 0
    %454 = vperm.xlu0 %453, %v380
    %v455 = vpop.permute.xlu0 %454
    %458 = vset.pattern.permute.xlu0 0
    %459 = vperm.xlu0 %458, %v381
    %v460 = vpop.permute.xlu0 %459
    %462 = vmatprep.subr.mxu0 0.0
    %463 = vmatpush1.msra.mxu0 %v334
    %464 = vmatprep.subr.mxu0 0.0
    %465 = vmatpush1.msra.mxu0 %v335
    %466 = vmatprep.subr.mxu0 0.0
    %467 = vmatpush1.msra.mxu0 %v336
    %468 = vmatprep.subr.mxu0 0.0
    %469 = vmatpush1.msra.mxu0 %v337
    %470 = vmatprep.subr.mxu0 0.0
    %471 = vmatpush1.msra.mxu0 %v338
    %472 = vmatprep.subr.mxu0 0.0
    %473 = vmatpush1.msra.mxu0 %v339
    %474 = vmatprep.subr.mxu0 0.0
    %475 = vmatpush1.msra.mxu0 %v340
    %476 = vmatprep.subr.mxu0 0.0
    %477 = vmatpush1.msra.mxu0 %v341
    %478 = vmatprep.subr.mxu0 0.0
    %479 = vmatpush1.msra.mxu0 %v342
    %480 = vmatprep.subr.mxu0 0.0
    %481 = vmatpush1.msra.mxu0 %v343
    %482 = vmatprep.subr.mxu0 0.0
    %483 = vmatpush1.msra.mxu0 %v344
    %484 = vmatprep.subr.mxu0 0.0
    %485 = vmatpush1.msra.mxu0 %v345
    %486 = vmatprep.subr.mxu0 0.0
    %487 = vmatpush1.msra.mxu0 %v346
    %488 = vmatprep.subr.mxu0 0.0
    %489 = vmatpush1.msra.mxu0 %v347
    %490 = vmatprep.subr.mxu0 0.0
    %491 = vmatpush1.msra.mxu0 %v348
    %492 = vmatprep.subr.mxu0 0.0
    %493 = vmatpush1.msra.mxu0 %v349
    %494 = vmatprep.subr.mxu0 0.0
    %495 = vmatpush1.msra.mxu0 0.0
    %496 = vmatprep.subr.mxu0 0.0
    %497 = vmatpush1.msra.mxu0 0.0
    %498 = vmatprep.subr.mxu0 0.0
    %499 = vmatpush1.msra.mxu0 0.0
    %500 = vmatprep.subr.mxu0 0.0
    %501 = vmatpush1.msra.mxu0 0.0
    %502 = vmatprep.subr.mxu0 0.0
    %503 = vmatpush1.msra.mxu0 0.0
    %504 = vmatprep.subr.mxu0 0.0
    %505 = vmatpush1.msra.mxu0 0.0
    %506 = vmatprep.subr.mxu0 0.0
    %507 = vmatpush1.msra.mxu0 0.0
    %508 = vmatprep.subr.mxu0 0.0
    %509 = vmatpush1.msra.mxu0 0.0
    %510 = vmatprep.subr.mxu0 0.0
    %511 = vmatpush1.msra.mxu0 0.0
    %512 = vmatprep.subr.mxu0 0.0
    %513 = vmatpush1.msra.mxu0 0.0
    %514 = vmatprep.subr.mxu0 0.0
    %515 = vmatpush1.msra.mxu0 0.0
    %516 = vmatprep.subr.mxu0 0.0
    %517 = vmatpush1.msra.mxu0 0.0
    %518 = vmatprep.subr.mxu0 0.0
    %519 = vmatpush1.msra.mxu0 0.0
    %520 = vmatprep.subr.mxu0 0.0
    %521 = vmatpush1.msra.mxu0 0.0
    %522 = vmatprep.subr.mxu0 0.0
    %523 = vmatpush1.msra.mxu0 0.0
    %524 = vmatprep.subr.mxu0 0.0
    %525 = vmatpush1.msra.mxu0 0.0
    %526 = vmatprep.mubr.f32.mxu0 0.0
    %527 = vmatmul.mubr.f32.gmra.mrb[0].mxu0 %v350
    %v528 = vpop.f32.mrb[0].mxu0
    %v529 = vadd.f32 %v385, %v528
    %v530 = vpop.f32.mrb[0].mxu0
    %531 = vmatprep.mubr.f32.mxu0 0.0
    %532 = vmatmul.mubr.f32.gmra.mrb[0].mxu0 %v351
    %v533 = vpop.f32.mrb[0].mxu0
    %v534 = vadd.f32 %v390, %v533
    %v535 = vpop.f32.mrb[0].mxu0
    %536 = vmatprep.mubr.f32.mxu0 0.0
    %537 = vmatmul.mubr.f32.gmra.mrb[0].mxu0 %v352
    %v538 = vpop.f32.mrb[0].mxu0
    %v539 = vadd.f32 %v395, %v538
    %v540 = vpop.f32.mrb[0].mxu0
    %541 = vmatprep.mubr.f32.mxu0 0.0
    %542 = vmatmul.mubr.f32.gmra.mrb[0].mxu0 %v353
    %v543 = vpop.f32.mrb[0].mxu0
    %v544 = vadd.f32 %v400, %v543
    %v545 = vpop.f32.mrb[0].mxu0
    %546 = vmatprep.mubr.f32.mxu0 0.0
    %547 = vmatmul.mubr.f32.gmra.mrb[0].mxu0 %v354
    %v548 = vpop.f32.mrb[0].mxu0
    %v549 = vadd.f32 %v405, %v548
    %v550 = vpop.f32.mrb[0].mxu0
    %551 = vmatprep.mubr.f32.mxu0 0.0
    %552 = vmatmul.mubr.f32.gmra.mrb[0].mxu0 %v355
    %v553 = vpop.f32.mrb[0].mxu0
    %v554 = vadd.f32 %v410, %v553
    %v555 = vpop.f32.mrb[0].mxu0
    %556 = vmatprep.mubr.f32.mxu0 0.0
    %557 = vmatmul.mubr.f32.gmra.mrb[0].mxu0 %v356
    %v558 = vpop.f32.mrb[0].mxu0
    %v559 = vadd.f32 %v415, %v558
    %v560 = vpop.f32.mrb[0].mxu0
    %561 = vmatprep.mubr.f32.mxu0 0.0
    %562 = vmatmul.mubr.f32.gmra.mrb[0].mxu0 %v357
    %v563 = vpop.f32.mrb[0].mxu0
    %v564 = vadd.f32 %v420, %v563
    %v565 = vpop.f32.mrb[0].mxu0
    %566 = vmatprep.mubr.f32.mxu0 0.0
    %567 = vmatmul.mubr.f32.gmra.mrb[0].mxu0 %v358
    %v568 = vpop.f32.mrb[0].mxu0
    %v569 = vadd.f32 %v425, %v568
    %v570 = vpop.f32.mrb[0].mxu0
    %571 = vmatprep.mubr.f32.mxu0 0.0
    %572 = vmatmul.mubr.f32.gmra.mrb[0].mxu0 %v359
    %v573 = vpop.f32.mrb[0].mxu0
    %v574 = vadd.f32 %v430, %v573
    %v575 = vpop.f32.mrb[0].mxu0
    %576 = vmatprep.mubr.f32.mxu0 0.0
    %577 = vmatmul.mubr.f32.gmra.mrb[0].mxu0 %v360
    %v578 = vpop.f32.mrb[0].mxu0
    %v579 = vadd.f32 %v435, %v578
    %v580 = vpop.f32.mrb[0].mxu0
    %581 = vmatprep.mubr.f32.mxu0 0.0
    %582 = vmatmul.mubr.f32.gmra.mrb[0].mxu0 %v361
    %v583 = vpop.f32.mrb[0].mxu0
    %v584 = vadd.f32 %v440, %v583
    %v585 = vpop.f32.mrb[0].mxu0
    %586 = vmatprep.mubr.f32.mxu0 0.0
    %587 = vmatmul.mubr.f32.gmra.mrb[0].mxu0 %v362
    %v588 = vpop.f32.mrb[0].mxu0
    %v589 = vadd.f32 %v445, %v588
    %v590 = vpop.f32.mrb[0].mxu0
    %591 = vmatprep.mubr.f32.mxu0 0.0
    %592 = vmatmul.mubr.f32.gmra.mrb[0].mxu0 %v363
    %v593 = vpop.f32.mrb[0].mxu0
    %v594 = vadd.f32 %v450, %v593
    %v595 = vpop.f32.mrb[0].mxu0
    %596 = vmatprep.mubr.f32.mxu0 0.0
    %597 = vmatmul.mubr.f32.gmra.mrb[0].mxu0 %v364
    %v598 = vpop.f32.mrb[0].mxu0
    %v599 = vadd.f32 %v455, %v598
    %v600 = vpop.f32.mrb[0].mxu0
    %601 = vmatprep.mubr.f32.mxu0 0.0
    %602 = vmatmul.mubr.f32.gmra.mrb[0].mxu0 %v365
    %v603 = vpop.f32.mrb[0].mxu0
    %v604 = vadd.f32 %v460, %v603
    %v605 = vpop.f32.mrb[0].mxu0
    %606 = vdwg.mxu0
    %v607 = vtanh.pop %v529
    %v608 = vtanh.pop %v534
    %v609 = vtanh.pop %v539
    %v610 = vtanh.pop %v544
    %v611 = vtanh.pop %v549
    %v612 = vtanh.pop %v554
    %v613 = vtanh.pop %v559
    %v614 = vtanh.pop %v564
    %v615 = vtanh.pop %v569
    %v616 = vtanh.pop %v574
    %v617 = vtanh.pop %v579
    %v618 = vtanh.pop %v584
    %v619 = vtanh.pop %v589
    %v620 = vtanh.pop %v594
    %v621 = vtanh.pop %v599
    %v622 = vtanh.pop %v604
    %s623 = scalar_lea.vmem %s3, 128
    %v624 = vld [vmem:[%s623] sm:$0xff]
    %v625 = vld [vmem:[%s623 + $0x8] sm:$0xff]
    %v626 = vld [vmem:[%s623 + $0x10] sm:$0xff]
    %v627 = vld [vmem:[%s623 + $0x18] sm:$0xff]
    %v628 = vld [vmem:[%s623 + $0x20] sm:$0xff]
    %v629 = vld [vmem:[%s623 + $0x28] sm:$0xff]
    %v630 = vld [vmem:[%s623 + $0x30] sm:$0xff]
    %v631 = vld [vmem:[%s623 + $0x38] sm:$0xff]
    %v632 = vld [vmem:[%s623 + $0x40] sm:$0xff]
    %v633 = vld [vmem:[%s623 + $0x48] sm:$0xff]
    %v634 = vld [vmem:[%s623 + $0x50] sm:$0xff]
    %v635 = vld [vmem:[%s623 + $0x58] sm:$0xff]
    %v636 = vld [vmem:[%s623 + $0x60] sm:$0xff]
    %v637 = vld [vmem:[%s623 + $0x68] sm:$0xff]
    %v638 = vld [vmem:[%s623 + $0x70] sm:$0xff]
    %v639 = vld [vmem:[%s623 + $0x78] sm:$0xff]
    %s640 = scalar_lea.vmem %s4, 128
    %v641 = vld [vmem:[%s640] sm:$0xff]
    %v642 = vld [vmem:[%s640 + $0x8] sm:$0xff]
    %v643 = vld [vmem:[%s640 + $0x10] sm:$0xff]
    %v644 = vld [vmem:[%s640 + $0x18] sm:$0xff]
    %v645 = vld [vmem:[%s640 + $0x20] sm:$0xff]
    %v646 = vld [vmem:[%s640 + $0x28] sm:$0xff]
    %v647 = vld [vmem:[%s640 + $0x30] sm:$0xff]
    %v648 = vld [vmem:[%s640 + $0x38] sm:$0xff]
    %v649 = vld [vmem:[%s640 + $0x40] sm:$0xff]
    %v650 = vld [vmem:[%s640 + $0x48] sm:$0xff]
    %v651 = vld [vmem:[%s640 + $0x50] sm:$0xff]
    %v652 = vld [vmem:[%s640 + $0x58] sm:$0xff]
    %v653 = vld [vmem:[%s640 + $0x60] sm:$0xff]
    %v654 = vld [vmem:[%s640 + $0x68] sm:$0xff]
    %v655 = vld [vmem:[%s640 + $0x70] sm:$0xff]
    %v656 = vld [vmem:[%s640 + $0x78] sm:$0xff]
    %658 = vset.pattern.permute.xlu0 0
    %659 = vperm.xlu0 %658, %v641
    %v660 = vpop.permute.xlu0 %659
    %663 = vset.pattern.permute.xlu0 0
    %664 = vperm.xlu0 %663, %v642
    %v665 = vpop.permute.xlu0 %664
    %668 = vset.pattern.permute.xlu0 0
    %669 = vperm.xlu0 %668, %v643
    %v670 = vpop.permute.xlu0 %669
    %673 = vset.pattern.permute.xlu0 0
    %674 = vperm.xlu0 %673, %v644
    %v675 = vpop.permute.xlu0 %674
    %678 = vset.pattern.permute.xlu0 0
    %679 = vperm.xlu0 %678, %v645
    %v680 = vpop.permute.xlu0 %679
    %683 = vset.pattern.permute.xlu0 0
    %684 = vperm.xlu0 %683, %v646
    %v685 = vpop.permute.xlu0 %684
    %688 = vset.pattern.permute.xlu0 0
    %689 = vperm.xlu0 %688, %v647
    %v690 = vpop.permute.xlu0 %689
    %693 = vset.pattern.permute.xlu0 0
    %694 = vperm.xlu0 %693, %v648
    %v695 = vpop.permute.xlu0 %694
    %698 = vset.pattern.permute.xlu0 0
    %699 = vperm.xlu0 %698, %v649
    %v700 = vpop.permute.xlu0 %699
    %703 = vset.pattern.permute.xlu0 0
    %704 = vperm.xlu0 %703, %v650
    %v705 = vpop.permute.xlu0 %704
    %708 = vset.pattern.permute.xlu0 0
    %709 = vperm.xlu0 %708, %v651
    %v710 = vpop.permute.xlu0 %709
    %713 = vset.pattern.permute.xlu0 0
    %714 = vperm.xlu0 %713, %v652
    %v715 = vpop.permute.xlu0 %714
    %718 = vset.pattern.permute.xlu0 0
    %719 = vperm.xlu0 %718, %v653
    %v720 = vpop.permute.xlu0 %719
    %723 = vset.pattern.permute.xlu0 0
    %724 = vperm.xlu0 %723, %v654
    %v725 = vpop.permute.xlu0 %724
    %728 = vset.pattern.permute.xlu0 0
    %729 = vperm.xlu0 %728, %v655
    %v730 = vpop.permute.xlu0 %729
    %733 = vset.pattern.permute.xlu0 0
    %734 = vperm.xlu0 %733, %v656
    %v735 = vpop.permute.xlu0 %734
    %737 = vmatprep.subr.mxu0 0.0
    %738 = vmatpush1.msra.mxu0 %v607
    %739 = vmatprep.subr.mxu0 0.0
    %740 = vmatpush1.msra.mxu0 %v608
    %741 = vmatprep.subr.mxu0 0.0
    %742 = vmatpush1.msra.mxu0 %v609
    %743 = vmatprep.subr.mxu0 0.0
    %744 = vmatpush1.msra.mxu0 %v610
    %745 = vmatprep.subr.mxu0 0.0
    %746 = vmatpush1.msra.mxu0 %v611
    %747 = vmatprep.subr.mxu0 0.0
    %748 = vmatpush1.msra.mxu0 %v612
    %749 = vmatprep.subr.mxu0 0.0
    %750 = vmatpush1.msra.mxu0 %v613
    %751 = vmatprep.subr.mxu0 0.0
    %752 = vmatpush1.msra.mxu0 %v614
    %753 = vmatprep.subr.mxu0 0.0
    %754 = vmatpush1.msra.mxu0 %v615
    %755 = vmatprep.subr.mxu0 0.0
    %756 = vmatpush1.msra.mxu0 %v616
    %757 = vmatprep.subr.mxu0 0.0
    %758 = vmatpush1.msra.mxu0 %v617
    %759 = vmatprep.subr.mxu0 0.0
    %760 = vmatpush1.msra.mxu0 %v618
    %761 = vmatprep.subr.mxu0 0.0
    %762 = vmatpush1.msra.mxu0 %v619
    %763 = vmatprep.subr.mxu0 0.0
    %764 = vmatpush1.msra.mxu0 %v620
    %765 = vmatprep.subr.mxu0 0.0
    %766 = vmatpush1.msra.mxu0 %v621
    %767 = vmatprep.subr.mxu0 0.0
    %768 = vmatpush1.msra.mxu0 %v622
    %769 = vmatprep.subr.mxu0 0.0
    %770 = vmatpush1.msra.mxu0 0.0
    %771 = vmatprep.subr.mxu0 0.0
    %772 = vmatpush1.msra.mxu0 0.0
    %773 = vmatprep.subr.mxu0 0.0
    %774 = vmatpush1.msra.mxu0 0.0
    %775 = vmatprep.subr.mxu0 0.0
    %776 = vmatpush1.msra.mxu0 0.0
    %777 = vmatprep.subr.mxu0 0.0
    %778 = vmatpush1.msra.mxu0 0.0
    %779 = vmatprep.subr.mxu0 0.0
    %780 = vmatpush1.msra.mxu0 0.0
    %781 = vmatprep.subr.mxu0 0.0
    %782 = vmatpush1.msra.mxu0 0.0
    %783 = vmatprep.subr.mxu0 0.0
    %784 = vmatpush1.msra.mxu0 0.0
    %785 = vmatprep.subr.mxu0 0.0
    %786 = vmatpush1.msra.mxu0 0.0
    %787 = vmatprep.subr.mxu0 0.0
    %788 = vmatpush1.msra.mxu0 0.0
    %789 = vmatprep.subr.mxu0 0.0
    %790 = vmatpush1.msra.mxu0 0.0
    %791 = vmatprep.subr.mxu0 0.0
    %792 = vmatpush1.msra.mxu0 0.0
    %793 = vmatprep.subr.mxu0 0.0
    %794 = vmatpush1.msra.mxu0 0.0
    %795 = vmatprep.subr.mxu0 0.0
    %796 = vmatpush1.msra.mxu0 0.0
    %797 = vmatprep.subr.mxu0 0.0
    %798 = vmatpush1.msra.mxu0 0.0
    %799 = vmatprep.subr.mxu0 0.0
    %800 = vmatpush1.msra.mxu0 0.0
    %801 = vmatprep.mubr.f32.mxu0 0.0
    %802 = vmatmul.mubr.f32.gmra.mrb[0].mxu0 %v624
    %v803 = vpop.f32.mrb[0].mxu0
    %v804 = vadd.f32 %v660, %v803
    %v805 = vpop.f32.mrb[0].mxu0
    %806 = vmatprep.mubr.f32.mxu0 0.0
    %807 = vmatmul.mubr.f32.gmra.mrb[0].mxu0 %v625
    %v808 = vpop.f32.mrb[0].mxu0
    %v809 = vadd.f32 %v665, %v808
    %v810 = vpop.f32.mrb[0].mxu0
    %811 = vmatprep.mubr.f32.mxu0 0.0
    %812 = vmatmul.mubr.f32.gmra.mrb[0].mxu0 %v626
    %v813 = vpop.f32.mrb[0].mxu0
    %v814 = vadd.f32 %v670, %v813
    %v815 = vpop.f32.mrb[0].mxu0
    %816 = vmatprep.mubr.f32.mxu0 0.0
    %817 = vmatmul.mubr.f32.gmra.mrb[0].mxu0 %v627
    %v818 = vpop.f32.mrb[0].mxu0
    %v819 = vadd.f32 %v675, %v818
    %v820 = vpop.f32.mrb[0].mxu0
    %821 = vmatprep.mubr.f32.mxu0 0.0
    %822 = vmatmul.mubr.f32.gmra.mrb[0].mxu0 %v628
    %v823 = vpop.f32.mrb[0].mxu0
    %v824 = vadd.f32 %v680, %v823
    %v825 = vpop.f32.mrb[0].mxu0
    %826 = vmatprep.mubr.f32.mxu0 0.0
    %827 = vmatmul.mubr.f32.gmra.mrb[0].mxu0 %v629
    %v828 = vpop.f32.mrb[0].mxu0
    %v829 = vadd.f32 %v685, %v828
    %v830 = vpop.f32.mrb[0].mxu0
    %831 = vmatprep.mubr.f32.mxu0 0.0
    %832 = vmatmul.mubr.f32.gmra.mrb[0].mxu0 %v630
    %v833 = vpop.f32.mrb[0].mxu0
    %v834 = vadd.f32 %v690, %v833
    %v835 = vpop.f32.mrb[0].mxu0
    %836 = vmatprep.mubr.f32.mxu0 0.0
    %837 = vmatmul.mubr.f32.gmra.mrb[0].mxu0 %v631
    %v838 = vpop.f32.mrb[0].mxu0
    %v839 = vadd.f32 %v695, %v838
    %v840 = vpop.f32.mrb[0].mxu0
    %841 = vmatprep.mubr.f32.mxu0 0.0
    %842 = vmatmul.mubr.f32.gmra.mrb[0].mxu0 %v632
    %v843 = vpop.f32.mrb[0].mxu0
    %v844 = vadd.f32 %v700, %v843
    %v845 = vpop.f32.mrb[0].mxu0
    %846 = vmatprep.mubr.f32.mxu0 0.0
    %847 = vmatmul.mubr.f32.gmra.mrb[0].mxu0 %v633
    %v848 = vpop.f32.mrb[0].mxu0
    %v849 = vadd.f32 %v705, %v848
    %v850 = vpop.f32.mrb[0].mxu0
    %851 = vmatprep.mubr.f32.mxu0 0.0
    %852 = vmatmul.mubr.f32.gmra.mrb[0].mxu0 %v634
    %v853 = vpop.f32.mrb[0].mxu0
    %v854 = vadd.f32 %v710, %v853
    %v855 = vpop.f32.mrb[0].mxu0
    %856 = vmatprep.mubr.f32.mxu0 0.0
    %857 = vmatmul.mubr.f32.gmra.mrb[0].mxu0 %v635
    %v858 = vpop.f32.mrb[0].mxu0
    %v859 = vadd.f32 %v715, %v858
    %v860 = vpop.f32.mrb[0].mxu0
    %861 = vmatprep.mubr.f32.mxu0 0.0
    %862 = vmatmul.mubr.f32.gmra.mrb[0].mxu0 %v636
    %v863 = vpop.f32.mrb[0].mxu0
    %v864 = vadd.f32 %v720, %v863
    %v865 = vpop.f32.mrb[0].mxu0
    %866 = vmatprep.mubr.f32.mxu0 0.0
    %867 = vmatmul.mubr.f32.gmra.mrb[0].mxu0 %v637
    %v868 = vpop.f32.mrb[0].mxu0
    %v869 = vadd.f32 %v725, %v868
    %v870 = vpop.f32.mrb[0].mxu0
    %871 = vmatprep.mubr.f32.mxu0 0.0
    %872 = vmatmul.mubr.f32.gmra.mrb[0].mxu0 %v638
    %v873 = vpop.f32.mrb[0].mxu0
    %v874 = vadd.f32 %v730, %v873
    %v875 = vpop.f32.mrb[0].mxu0
    %876 = vmatprep.mubr.f32.mxu0 0.0
    %877 = vmatmul.mubr.f32.gmra.mrb[0].mxu0 %v639
    %v878 = vpop.f32.mrb[0].mxu0
    %v879 = vadd.f32 %v735, %v878
    %v880 = vpop.f32.mrb[0].mxu0
    %881 = vdwg.mxu0
    %v882 = vtanh.pop %v804
    %v883 = vtanh.pop %v809
    %v884 = vtanh.pop %v814
    %v885 = vtanh.pop %v819
    %v886 = vtanh.pop %v824
    %v887 = vtanh.pop %v829
    %v888 = vtanh.pop %v834
    %v889 = vtanh.pop %v839
    %v890 = vtanh.pop %v844
    %v891 = vtanh.pop %v849
    %v892 = vtanh.pop %v854
    %v893 = vtanh.pop %v859
    %v894 = vtanh.pop %v864
    %v895 = vtanh.pop %v869
    %v896 = vtanh.pop %v874
    %v897 = vtanh.pop %v879
    %s898 = scalar_lea.vmem %s3, 256
    %v899 = vld [vmem:[%s898] sm:$0xff]
    %v900 = vld [vmem:[%s898 + $0x8] sm:$0xff]
    %v901 = vld [vmem:[%s898 + $0x10] sm:$0xff]
    %v902 = vld [vmem:[%s898 + $0x18] sm:$0xff]
    %v903 = vld [vmem:[%s898 + $0x20] sm:$0xff]
    %v904 = vld [vmem:[%s898 + $0x28] sm:$0xff]
    %v905 = vld [vmem:[%s898 + $0x30] sm:$0xff]
    %v906 = vld [vmem:[%s898 + $0x38] sm:$0xff]
    %v907 = vld [vmem:[%s898 + $0x40] sm:$0xff]
    %v908 = vld [vmem:[%s898 + $0x48] sm:$0xff]
    %v909 = vld [vmem:[%s898 + $0x50] sm:$0xff]
    %v910 = vld [vmem:[%s898 + $0x58] sm:$0xff]
    %v911 = vld [vmem:[%s898 + $0x60] sm:$0xff]
    %v912 = vld [vmem:[%s898 + $0x68] sm:$0xff]
    %v913 = vld [vmem:[%s898 + $0x70] sm:$0xff]
    %v914 = vld [vmem:[%s898 + $0x78] sm:$0xff]
    %s915 = scalar_lea.vmem %s4, 256
    %v916 = vld [vmem:[%s915] sm:$0xff]
    %v917 = vld [vmem:[%s915 + $0x8] sm:$0xff]
    %v918 = vld [vmem:[%s915 + $0x10] sm:$0xff]
    %v919 = vld [vmem:[%s915 + $0x18] sm:$0xff]
    %v920 = vld [vmem:[%s915 + $0x20] sm:$0xff]
    %v921 = vld [vmem:[%s915 + $0x28] sm:$0xff]
    %v922 = vld [vmem:[%s915 + $0x30] sm:$0xff]
    %v923 = vld [vmem:[%s915 + $0x38] sm:$0xff]
    %v924 = vld [vmem:[%s915 + $0x40] sm:$0xff]
    %v925 = vld [vmem:[%s915 + $0x48] sm:$0xff]
    %v926 = vld [vmem:[%s915 + $0x50] sm:$0xff]
    %v927 = vld [vmem:[%s915 + $0x58] sm:$0xff]
    %v928 = vld [vmem:[%s915 + $0x60] sm:$0xff]
    %v929 = vld [vmem:[%s915 + $0x68] sm:$0xff]
    %v930 = vld [vmem:[%s915 + $0x70] sm:$0xff]
    %v931 = vld [vmem:[%s915 + $0x78] sm:$0xff]
    %933 = vset.pattern.permute.xlu0 0
    %934 = vperm.xlu0 %933, %v916
    %v935 = vpop.permute.xlu0 %934
    %938 = vset.pattern.permute.xlu0 0
    %939 = vperm.xlu0 %938, %v917
    %v940 = vpop.permute.xlu0 %939
    %943 = vset.pattern.permute.xlu0 0
    %944 = vperm.xlu0 %943, %v918
    %v945 = vpop.permute.xlu0 %944
    %948 = vset.pattern.permute.xlu0 0
    %949 = vperm.xlu0 %948, %v919
    %v950 = vpop.permute.xlu0 %949
    %953 = vset.pattern.permute.xlu0 0
    %954 = vperm.xlu0 %953, %v920
    %v955 = vpop.permute.xlu0 %954
    %958 = vset.pattern.permute.xlu0 0
    %959 = vperm.xlu0 %958, %v921
    %v960 = vpop.permute.xlu0 %959
    %963 = vset.pattern.permute.xlu0 0
    %964 = vperm.xlu0 %963, %v922
    %v965 = vpop.permute.xlu0 %964
    %968 = vset.pattern.permute.xlu0 0
    %969 = vperm.xlu0 %968, %v923
    %v970 = vpop.permute.xlu0 %969
    %973 = vset.pattern.permute.xlu0 0
    %974 = vperm.xlu0 %973, %v924
    %v975 = vpop.permute.xlu0 %974
    %978 = vset.pattern.permute.xlu0 0
    %979 = vperm.xlu0 %978, %v925
    %v980 = vpop.permute.xlu0 %979
    %983 = vset.pattern.permute.xlu0 0
    %984 = vperm.xlu0 %983, %v926
    %v985 = vpop.permute.xlu0 %984
    %988 = vset.pattern.permute.xlu0 0
    %989 = vperm.xlu0 %988, %v927
    %v990 = vpop.permute.xlu0 %989
    %993 = vset.pattern.permute.xlu0 0
    %994 = vperm.xlu0 %993, %v928
    %v995 = vpop.permute.xlu0 %994
    %998 = vset.pattern.permute.xlu0 0
    %999 = vperm.xlu0 %998, %v929
    %v1000 = vpop.permute.xlu0 %999
    %1003 = vset.pattern.permute.xlu0 0
    %1004 = vperm.xlu0 %1003, %v930
    %v1005 = vpop.permute.xlu0 %1004
    %1008 = vset.pattern.permute.xlu0 0
    %1009 = vperm.xlu0 %1008, %v931
    %v1010 = vpop.permute.xlu0 %1009
    %1012 = vmatprep.subr.mxu0 0.0
    %1013 = vmatpush1.msra.mxu0 %v882
    %1014 = vmatprep.subr.mxu0 0.0
    %1015 = vmatpush1.msra.mxu0 %v883
    %1016 = vmatprep.subr.mxu0 0.0
    %1017 = vmatpush1.msra.mxu0 %v884
    %1018 = vmatprep.subr.mxu0 0.0
    %1019 = vmatpush1.msra.mxu0 %v885
    %1020 = vmatprep.subr.mxu0 0.0
    %1021 = vmatpush1.msra.mxu0 %v886
    %1022 = vmatprep.subr.mxu0 0.0
    %1023 = vmatpush1.msra.mxu0 %v887
    %1024 = vmatprep.subr.mxu0 0.0
    %1025 = vmatpush1.msra.mxu0 %v888
    %1026 = vmatprep.subr.mxu0 0.0
    %1027 = vmatpush1.msra.mxu0 %v889
    %1028 = vmatprep.subr.mxu0 0.0
    %1029 = vmatpush1.msra.mxu0 %v890
    %1030 = vmatprep.subr.mxu0 0.0
    %1031 = vmatpush1.msra.mxu0 %v891
    %1032 = vmatprep.subr.mxu0 0.0
    %1033 = vmatpush1.msra.mxu0 %v892
    %1034 = vmatprep.subr.mxu0 0.0
    %1035 = vmatpush1.msra.mxu0 %v893
    %1036 = vmatprep.subr.mxu0 0.0
    %1037 = vmatpush1.msra.mxu0 %v894
    %1038 = vmatprep.subr.mxu0 0.0
    %1039 = vmatpush1.msra.mxu0 %v895
    %1040 = vmatprep.subr.mxu0 0.0
    %1041 = vmatpush1.msra.mxu0 %v896
    %1042 = vmatprep.subr.mxu0 0.0
    %1043 = vmatpush1.msra.mxu0 %v897
    %1044 = vmatprep.subr.mxu0 0.0
    %1045 = vmatpush1.msra.mxu0 0.0
    %1046 = vmatprep.subr.mxu0 0.0
    %1047 = vmatpush1.msra.mxu0 0.0
    %1048 = vmatprep.subr.mxu0 0.0
    %1049 = vmatpush1.msra.mxu0 0.0
    %1050 = vmatprep.subr.mxu0 0.0
    %1051 = vmatpush1.msra.mxu0 0.0
    %1052 = vmatprep.subr.mxu0 0.0
    %1053 = vmatpush1.msra.mxu0 0.0
    %1054 = vmatprep.subr.mxu0 0.0
    %1055 = vmatpush1.msra.mxu0 0.0
    %1056 = vmatprep.subr.mxu0 0.0
    %1057 = vmatpush1.msra.mxu0 0.0
    %1058 = vmatprep.subr.mxu0 0.0
    %1059 = vmatpush1.msra.mxu0 0.0
    %1060 = vmatprep.subr.mxu0 0.0
    %1061 = vmatpush1.msra.mxu0 0.0
    %1062 = vmatprep.subr.mxu0 0.0
    %1063 = vmatpush1.msra.mxu0 0.0
    %1064 = vmatprep.subr.mxu0 0.0
    %1065 = vmatpush1.msra.mxu0 0.0
    %1066 = vmatprep.subr.mxu0 0.0
    %1067 = vmatpush1.msra.mxu0 0.0
    %1068 = vmatprep.subr.mxu0 0.0
    %1069 = vmatpush1.msra.mxu0 0.0
    %1070 = vmatprep.subr.mxu0 0.0
    %1071 = vmatpush1.msra.mxu0 0.0
    %1072 = vmatprep.subr.mxu0 0.0
    %1073 = vmatpush1.msra.mxu0 0.0
    %1074 = vmatprep.subr.mxu0 0.0
    %1075 = vmatpush1.msra.mxu0 0.0
    %1076 = vmatprep.mubr.f32.mxu0 0.0
    %1077 = vmatmul.mubr.f32.gmra.mrb[0].mxu0 %v899
    %v1078 = vpop.f32.mrb[0].mxu0
    %v1079 = vadd.f32 %v935, %v1078
    %v1080 = vpop.f32.mrb[0].mxu0
    %1081 = vmatprep.mubr.f32.mxu0 0.0
    %1082 = vmatmul.mubr.f32.gmra.mrb[0].mxu0 %v900
    %v1083 = vpop.f32.mrb[0].mxu0
    %v1084 = vadd.f32 %v940, %v1083
    %v1085 = vpop.f32.mrb[0].mxu0
    %1086 = vmatprep.mubr.f32.mxu0 0.0
    %1087 = vmatmul.mubr.f32.gmra.mrb[0].mxu0 %v901
    %v1088 = vpop.f32.mrb[0].mxu0
    %v1089 = vadd.f32 %v945, %v1088
    %v1090 = vpop.f32.mrb[0].mxu0
    %1091 = vmatprep.mubr.f32.mxu0 0.0
    %1092 = vmatmul.mubr.f32.gmra.mrb[0].mxu0 %v902
    %v1093 = vpop.f32.mrb[0].mxu0
    %v1094 = vadd.f32 %v950, %v1093
    %v1095 = vpop.f32.mrb[0].mxu0
    %1096 = vmatprep.mubr.f32.mxu0 0.0
    %1097 = vmatmul.mubr.f32.gmra.mrb[0].mxu0 %v903
    %v1098 = vpop.f32.mrb[0].mxu0
    %v1099 = vadd.f32 %v955, %v1098
    %v1100 = vpop.f32.mrb[0].mxu0
    %1101 = vmatprep.mubr.f32.mxu0 0.0
    %1102 = vmatmul.mubr.f32.gmra.mrb[0].mxu0 %v904
    %v1103 = vpop.f32.mrb[0].mxu0
    %v1104 = vadd.f32 %v960, %v1103
    %v1105 = vpop.f32.mrb[0].mxu0
    %1106 = vmatprep.mubr.f32.mxu0 0.0
    %1107 = vmatmul.mubr.f32.gmra.mrb[0].mxu0 %v905
    %v1108 = vpop.f32.mrb[0].mxu0
    %v1109 = vadd.f32 %v965, %v1108
    %v1110 = vpop.f32.mrb[0].mxu0
    %1111 = vmatprep.mubr.f32.mxu0 0.0
    %1112 = vmatmul.mubr.f32.gmra.mrb[0].mxu0 %v906
    %v1113 = vpop.f32.mrb[0].mxu0
    %v1114 = vadd.f32 %v970, %v1113
    %v1115 = vpop.f32.mrb[0].mxu0
    %1116 = vmatprep.mubr.f32.mxu0 0.0
    %1117 = vmatmul.mubr.f32.gmra.mrb[0].mxu0 %v907
    %v1118 = vpop.f32.mrb[0].mxu0
    %v1119 = vadd.f32 %v975, %v1118
    %v1120 = vpop.f32.mrb[0].mxu0
    %1121 = vmatprep.mubr.f32.mxu0 0.0
    %1122 = vmatmul.mubr.f32.gmra.mrb[0].mxu0 %v908
    %v1123 = vpop.f32.mrb[0].mxu0
    %v1124 = vadd.f32 %v980, %v1123
    %v1125 = vpop.f32.mrb[0].mxu0
    %1126 = vmatprep.mubr.f32.mxu0 0.0
    %1127 = vmatmul.mubr.f32.gmra.mrb[0].mxu0 %v909
    %v1128 = vpop.f32.mrb[0].mxu0
    %v1129 = vadd.f32 %v985, %v1128
    %v1130 = vpop.f32.mrb[0].mxu0
    %1131 = vmatprep.mubr.f32.mxu0 0.0
    %1132 = vmatmul.mubr.f32.gmra.mrb[0].mxu0 %v910
    %v1133 = vpop.f32.mrb[0].mxu0
    %v1134 = vadd.f32 %v990, %v1133
    %v1135 = vpop.f32.mrb[0].mxu0
    %1136 = vmatprep.mubr.f32.mxu0 0.0
    %1137 = vmatmul.mubr.f32.gmra.mrb[0].mxu0 %v911
    %v1138 = vpop.f32.mrb[0].mxu0
    %v1139 = vadd.f32 %v995, %v1138
    %v1140 = vpop.f32.mrb[0].mxu0
    %1141 = vmatprep.mubr.f32.mxu0 0.0
    %1142 = vmatmul.mubr.f32.gmra.mrb[0].mxu0 %v912
    %v1143 = vpop.f32.mrb[0].mxu0
    %v1144 = vadd.f32 %v1000, %v1143
    %v1145 = vpop.f32.mrb[0].mxu0
    %1146 = vmatprep.mubr.f32.mxu0 0.0
    %1147 = vmatmul.mubr.f32.gmra.mrb[0].mxu0 %v913
    %v1148 = vpop.f32.mrb[0].mxu0
    %v1149 = vadd.f32 %v1005, %v1148
    %v1150 = vpop.f32.mrb[0].mxu0
    %1151 = vmatprep.mubr.f32.mxu0 0.0
    %1152 = vmatmul.mubr.f32.gmra.mrb[0].mxu0 %v914
    %v1153 = vpop.f32.mrb[0].mxu0
    %v1154 = vadd.f32 %v1010, %v1153
    %v1155 = vpop.f32.mrb[0].mxu0
    %1156 = vdwg.mxu0
    %v1157 = vtanh.pop %v1079
    %v1158 = vtanh.pop %v1084
    %v1159 = vtanh.pop %v1089
    %v1160 = vtanh.pop %v1094
    %v1161 = vtanh.pop %v1099
    %v1162 = vtanh.pop %v1104
    %v1163 = vtanh.pop %v1109
    %v1164 = vtanh.pop %v1114
    %v1165 = vtanh.pop %v1119
    %v1166 = vtanh.pop %v1124
    %v1167 = vtanh.pop %v1129
    %v1168 = vtanh.pop %v1134
    %v1169 = vtanh.pop %v1139
    %v1170 = vtanh.pop %v1144
    %v1171 = vtanh.pop %v1149
    %v1172 = vtanh.pop %v1154
    %s1173 = scalar_lea.vmem %s3, 384
    %v1174 = vld [vmem:[%s1173] sm:$0xff]
    %v1175 = vld [vmem:[%s1173 + $0x8] sm:$0xff]
    %v1176 = vld [vmem:[%s1173 + $0x10] sm:$0xff]
    %v1177 = vld [vmem:[%s1173 + $0x18] sm:$0xff]
    %v1178 = vld [vmem:[%s1173 + $0x20] sm:$0xff]
    %v1179 = vld [vmem:[%s1173 + $0x28] sm:$0xff]
    %v1180 = vld [vmem:[%s1173 + $0x30] sm:$0xff]
    %v1181 = vld [vmem:[%s1173 + $0x38] sm:$0xff]
    %v1182 = vld [vmem:[%s1173 + $0x40] sm:$0xff]
    %v1183 = vld [vmem:[%s1173 + $0x48] sm:$0xff]
    %v1184 = vld [vmem:[%s1173 + $0x50] sm:$0xff]
    %v1185 = vld [vmem:[%s1173 + $0x58] sm:$0xff]
    %v1186 = vld [vmem:[%s1173 + $0x60] sm:$0xff]
    %v1187 = vld [vmem:[%s1173 + $0x68] sm:$0xff]
    %v1188 = vld [vmem:[%s1173 + $0x70] sm:$0xff]
    %v1189 = vld [vmem:[%s1173 + $0x78] sm:$0xff]
    %s1190 = scalar_lea.vmem %s4, 384
    %v1191 = vld [vmem:[%s1190] sm:$0xff]
    %v1192 = vld [vmem:[%s1190 + $0x8] sm:$0xff]
    %v1193 = vld [vmem:[%s1190 + $0x10] sm:$0xff]
    %v1194 = vld [vmem:[%s1190 + $0x18] sm:$0xff]
    %v1195 = vld [vmem:[%s1190 + $0x20] sm:$0xff]
    %v1196 = vld [vmem:[%s1190 + $0x28] sm:$0xff]
    %v1197 = vld [vmem:[%s1190 + $0x30] sm:$0xff]
    %v1198 = vld [vmem:[%s1190 + $0x38] sm:$0xff]
    %v1199 = vld [vmem:[%s1190 + $0x40] sm:$0xff]
    %v1200 = vld [vmem:[%s1190 + $0x48] sm:$0xff]
    %v1201 = vld [vmem:[%s1190 + $0x50] sm:$0xff]
    %v1202 = vld [vmem:[%s1190 + $0x58] sm:$0xff]
    %v1203 = vld [vmem:[%s1190 + $0x60] sm:$0xff]
    %v1204 = vld [vmem:[%s1190 + $0x68] sm:$0xff]
    %v1205 = vld [vmem:[%s1190 + $0x70] sm:$0xff]
    %v1206 = vld [vmem:[%s1190 + $0x78] sm:$0xff]
    %1208 = vset.pattern.permute.xlu0 0
    %1209 = vperm.xlu0 %1208, %v1191
    %v1210 = vpop.permute.xlu0 %1209
    %1213 = vset.pattern.permute.xlu0 0
    %1214 = vperm.xlu0 %1213, %v1192
    %v1215 = vpop.permute.xlu0 %1214
    %1218 = vset.pattern.permute.xlu0 0
    %1219 = vperm.xlu0 %1218, %v1193
    %v1220 = vpop.permute.xlu0 %1219
    %1223 = vset.pattern.permute.xlu0 0
    %1224 = vperm.xlu0 %1223, %v1194
    %v1225 = vpop.permute.xlu0 %1224
    %1228 = vset.pattern.permute.xlu0 0
    %1229 = vperm.xlu0 %1228, %v1195
    %v1230 = vpop.permute.xlu0 %1229
    %1233 = vset.pattern.permute.xlu0 0
    %1234 = vperm.xlu0 %1233, %v1196
    %v1235 = vpop.permute.xlu0 %1234
    %1238 = vset.pattern.permute.xlu0 0
    %1239 = vperm.xlu0 %1238, %v1197
    %v1240 = vpop.permute.xlu0 %1239
    %1243 = vset.pattern.permute.xlu0 0
    %1244 = vperm.xlu0 %1243, %v1198
    %v1245 = vpop.permute.xlu0 %1244
    %1248 = vset.pattern.permute.xlu0 0
    %1249 = vperm.xlu0 %1248, %v1199
    %v1250 = vpop.permute.xlu0 %1249
    %1253 = vset.pattern.permute.xlu0 0
    %1254 = vperm.xlu0 %1253, %v1200
    %v1255 = vpop.permute.xlu0 %1254
    %1258 = vset.pattern.permute.xlu0 0
    %1259 = vperm.xlu0 %1258, %v1201
    %v1260 = vpop.permute.xlu0 %1259
    %1263 = vset.pattern.permute.xlu0 0
    %1264 = vperm.xlu0 %1263, %v1202
    %v1265 = vpop.permute.xlu0 %1264
    %1268 = vset.pattern.permute.xlu0 0
    %1269 = vperm.xlu0 %1268, %v1203
    %v1270 = vpop.permute.xlu0 %1269
    %1273 = vset.pattern.permute.xlu0 0
    %1274 = vperm.xlu0 %1273, %v1204
    %v1275 = vpop.permute.xlu0 %1274
    %1278 = vset.pattern.permute.xlu0 0
    %1279 = vperm.xlu0 %1278, %v1205
    %v1280 = vpop.permute.xlu0 %1279
    %1283 = vset.pattern.permute.xlu0 0
    %1284 = vperm.xlu0 %1283, %v1206
    %v1285 = vpop.permute.xlu0 %1284
    %1287 = vmatprep.subr.mxu0 0.0
    %1288 = vmatpush1.msra.mxu0 %v1157
    %1289 = vmatprep.subr.mxu0 0.0
    %1290 = vmatpush1.msra.mxu0 %v1158
    %1291 = vmatprep.subr.mxu0 0.0
    %1292 = vmatpush1.msra.mxu0 %v1159
    %1293 = vmatprep.subr.mxu0 0.0
    %1294 = vmatpush1.msra.mxu0 %v1160
    %1295 = vmatprep.subr.mxu0 0.0
    %1296 = vmatpush1.msra.mxu0 %v1161
    %1297 = vmatprep.subr.mxu0 0.0
    %1298 = vmatpush1.msra.mxu0 %v1162
    %1299 = vmatprep.subr.mxu0 0.0
    %1300 = vmatpush1.msra.mxu0 %v1163
    %1301 = vmatprep.subr.mxu0 0.0
    %1302 = vmatpush1.msra.mxu0 %v1164
    %1303 = vmatprep.subr.mxu0 0.0
    %1304 = vmatpush1.msra.mxu0 %v1165
    %1305 = vmatprep.subr.mxu0 0.0
    %1306 = vmatpush1.msra.mxu0 %v1166
    %1307 = vmatprep.subr.mxu0 0.0
    %1308 = vmatpush1.msra.mxu0 %v1167
    %1309 = vmatprep.subr.mxu0 0.0
    %1310 = vmatpush1.msra.mxu0 %v1168
    %1311 = vmatprep.subr.mxu0 0.0
    %1312 = vmatpush1.msra.mxu0 %v1169
    %1313 = vmatprep.subr.mxu0 0.0
    %1314 = vmatpush1.msra.mxu0 %v1170
    %1315 = vmatprep.subr.mxu0 0.0
    %1316 = vmatpush1.msra.mxu0 %v1171
    %1317 = vmatprep.subr.mxu0 0.0
    %1318 = vmatpush1.msra.mxu0 %v1172
    %1319 = vmatprep.subr.mxu0 0.0
    %1320 = vmatpush1.msra.mxu0 0.0
    %1321 = vmatprep.subr.mxu0 0.0
    %1322 = vmatpush1.msra.mxu0 0.0
    %1323 = vmatprep.subr.mxu0 0.0
    %1324 = vmatpush1.msra.mxu0 0.0
    %1325 = vmatprep.subr.mxu0 0.0
    %1326 = vmatpush1.msra.mxu0 0.0
    %1327 = vmatprep.subr.mxu0 0.0
    %1328 = vmatpush1.msra.mxu0 0.0
    %1329 = vmatprep.subr.mxu0 0.0
    %1330 = vmatpush1.msra.mxu0 0.0
    %1331 = vmatprep.subr.mxu0 0.0
    %1332 = vmatpush1.msra.mxu0 0.0
    %1333 = vmatprep.subr.mxu0 0.0
    %1334 = vmatpush1.msra.mxu0 0.0
    %1335 = vmatprep.subr.mxu0 0.0
    %1336 = vmatpush1.msra.mxu0 0.0
    %1337 = vmatprep.subr.mxu0 0.0
    %1338 = vmatpush1.msra.mxu0 0.0
    %1339 = vmatprep.subr.mxu0 0.0
    %1340 = vmatpush1.msra.mxu0 0.0
    %1341 = vmatprep.subr.mxu0 0.0
    %1342 = vmatpush1.msra.mxu0 0.0
    %1343 = vmatprep.subr.mxu0 0.0
    %1344 = vmatpush1.msra.mxu0 0.0
    %1345 = vmatprep.subr.mxu0 0.0
    %1346 = vmatpush1.msra.mxu0 0.0
    %1347 = vmatprep.subr.mxu0 0.0
    %1348 = vmatpush1.msra.mxu0 0.0
    %1349 = vmatprep.subr.mxu0 0.0
    %1350 = vmatpush1.msra.mxu0 0.0
    %1351 = vmatprep.mubr.f32.mxu0 0.0
    %1352 = vmatmul.mubr.f32.gmra.mrb[0].mxu0 %v1174
    %v1353 = vpop.f32.mrb[0].mxu0
    %v1354 = vadd.f32 %v1210, %v1353
    %v1355 = vpop.f32.mrb[0].mxu0
    %1356 = vmatprep.mubr.f32.mxu0 0.0
    %1357 = vmatmul.mubr.f32.gmra.mrb[0].mxu0 %v1175
    %v1358 = vpop.f32.mrb[0].mxu0
    %v1359 = vadd.f32 %v1215, %v1358
    %v1360 = vpop.f32.mrb[0].mxu0
    %1361 = vmatprep.mubr.f32.mxu0 0.0
    %1362 = vmatmul.mubr.f32.gmra.mrb[0].mxu0 %v1176
    %v1363 = vpop.f32.mrb[0].mxu0
    %v1364 = vadd.f32 %v1220, %v1363
    %v1365 = vpop.f32.mrb[0].mxu0
    %1366 = vmatprep.mubr.f32.mxu0 0.0
    %1367 = vmatmul.mubr.f32.gmra.mrb[0].mxu0 %v1177
    %v1368 = vpop.f32.mrb[0].mxu0
    %v1369 = vadd.f32 %v1225, %v1368
    %v1370 = vpop.f32.mrb[0].mxu0
    %1371 = vmatprep.mubr.f32.mxu0 0.0
    %1372 = vmatmul.mubr.f32.gmra.mrb[0].mxu0 %v1178
    %v1373 = vpop.f32.mrb[0].mxu0
    %v1374 = vadd.f32 %v1230, %v1373
    %v1375 = vpop.f32.mrb[0].mxu0
    %1376 = vmatprep.mubr.f32.mxu0 0.0
    %1377 = vmatmul.mubr.f32.gmra.mrb[0].mxu0 %v1179
    %v1378 = vpop.f32.mrb[0].mxu0
    %v1379 = vadd.f32 %v1235, %v1378
    %v1380 = vpop.f32.mrb[0].mxu0
    %1381 = vmatprep.mubr.f32.mxu0 0.0
    %1382 = vmatmul.mubr.f32.gmra.mrb[0].mxu0 %v1180
    %v1383 = vpop.f32.mrb[0].mxu0
    %v1384 = vadd.f32 %v1240, %v1383
    %v1385 = vpop.f32.mrb[0].mxu0
    %1386 = vmatprep.mubr.f32.mxu0 0.0
    %1387 = vmatmul.mubr.f32.gmra.mrb[0].mxu0 %v1181
    %v1388 = vpop.f32.mrb[0].mxu0
    %v1389 = vadd.f32 %v1245, %v1388
    %v1390 = vpop.f32.mrb[0].mxu0
    %1391 = vmatprep.mubr.f32.mxu0 0.0
    %1392 = vmatmul.mubr.f32.gmra.mrb[0].mxu0 %v1182
    %v1393 = vpop.f32.mrb[0].mxu0
    %v1394 = vadd.f32 %v1250, %v1393
    %v1395 = vpop.f32.mrb[0].mxu0
    %1396 = vmatprep.mubr.f32.mxu0 0.0
    %1397 = vmatmul.mubr.f32.gmra.mrb[0].mxu0 %v1183
    %v1398 = vpop.f32.mrb[0].mxu0
    %v1399 = vadd.f32 %v1255, %v1398
    %v1400 = vpop.f32.mrb[0].mxu0
    %1401 = vmatprep.mubr.f32.mxu0 0.0
    %1402 = vmatmul.mubr.f32.gmra.mrb[0].mxu0 %v1184
    %v1403 = vpop.f32.mrb[0].mxu0
    %v1404 = vadd.f32 %v1260, %v1403
    %v1405 = vpop.f32.mrb[0].mxu0
    %1406 = vmatprep.mubr.f32.mxu0 0.0
    %1407 = vmatmul.mubr.f32.gmra.mrb[0].mxu0 %v1185
    %v1408 = vpop.f32.mrb[0].mxu0
    %v1409 = vadd.f32 %v1265, %v1408
    %v1410 = vpop.f32.mrb[0].mxu0
    %1411 = vmatprep.mubr.f32.mxu0 0.0
    %1412 = vmatmul.mubr.f32.gmra.mrb[0].mxu0 %v1186
    %v1413 = vpop.f32.mrb[0].mxu0
    %v1414 = vadd.f32 %v1270, %v1413
    %v1415 = vpop.f32.mrb[0].mxu0
    %1416 = vmatprep.mubr.f32.mxu0 0.0
    %1417 = vmatmul.mubr.f32.gmra.mrb[0].mxu0 %v1187
    %v1418 = vpop.f32.mrb[0].mxu0
    %v1419 = vadd.f32 %v1275, %v1418
    %v1420 = vpop.f32.mrb[0].mxu0
    %1421 = vmatprep.mubr.f32.mxu0 0.0
    %1422 = vmatmul.mubr.f32.gmra.mrb[0].mxu0 %v1188
    %v1423 = vpop.f32.mrb[0].mxu0
    %v1424 = vadd.f32 %v1280, %v1423
    %v1425 = vpop.f32.mrb[0].mxu0
    %1426 = vmatprep.mubr.f32.mxu0 0.0
    %1427 = vmatmul.mubr.f32.gmra.mrb[0].mxu0 %v1189
    %v1428 = vpop.f32.mrb[0].mxu0
    %v1429 = vadd.f32 %v1285, %v1428
    %v1430 = vpop.f32.mrb[0].mxu0
    %1431 = vdwg.mxu0
    %v1432 = vtanh.pop %v1354
    %v1433 = vtanh.pop %v1359
    %v1434 = vtanh.pop %v1364
    %v1435 = vtanh.pop %v1369
    %v1436 = vtanh.pop %v1374
    %v1437 = vtanh.pop %v1379
    %v1438 = vtanh.pop %v1384
    %v1439 = vtanh.pop %v1389
    %v1440 = vtanh.pop %v1394
    %v1441 = vtanh.pop %v1399
    %v1442 = vtanh.pop %v1404
    %v1443 = vtanh.pop %v1409
    %v1444 = vtanh.pop %v1414
    %v1445 = vtanh.pop %v1419
    %v1446 = vtanh.pop %v1424
    %v1447 = vtanh.pop %v1429
    %v1448 = vld [vmem:[%s5] sm:$0xff]
    %v1449 = vld [vmem:[%s6] sm:$0xff]
    %1451 = vset.pattern.permute.xlu0 0
    %1452 = vperm.xlu0 %1451, %v1449
    %v1453 = vpop.permute.xlu0 %1452
    %1455 = vmatprep.subr.mxu0 0.0
    %1456 = vmatpush1.msra.mxu0 %v1432
    %1457 = vmatprep.subr.mxu0 0.0
    %1458 = vmatpush1.msra.mxu0 %v1433
    %1459 = vmatprep.subr.mxu0 0.0
    %1460 = vmatpush1.msra.mxu0 %v1434
    %1461 = vmatprep.subr.mxu0 0.0
    %1462 = vmatpush1.msra.mxu0 %v1435
    %1463 = vmatprep.subr.mxu0 0.0
    %1464 = vmatpush1.msra.mxu0 %v1436
    %1465 = vmatprep.subr.mxu0 0.0
    %1466 = vmatpush1.msra.mxu0 %v1437
    %1467 = vmatprep.subr.mxu0 0.0
    %1468 = vmatpush1.msra.mxu0 %v1438
    %1469 = vmatprep.subr.mxu0 0.0
    %1470 = vmatpush1.msra.mxu0 %v1439
    %1471 = vmatprep.subr.mxu0 0.0
    %1472 = vmatpush1.msra.mxu0 %v1440
    %1473 = vmatprep.subr.mxu0 0.0
    %1474 = vmatpush1.msra.mxu0 %v1441
    %1475 = vmatprep.subr.mxu0 0.0
    %1476 = vmatpush1.msra.mxu0 %v1442
    %1477 = vmatprep.subr.mxu0 0.0
    %1478 = vmatpush1.msra.mxu0 %v1443
    %1479 = vmatprep.subr.mxu0 0.0
    %1480 = vmatpush1.msra.mxu0 %v1444
    %1481 = vmatprep.subr.mxu0 0.0
    %1482 = vmatpush1.msra.mxu0 %v1445
    %1483 = vmatprep.subr.mxu0 0.0
    %1484 = vmatpush1.msra.mxu0 %v1446
    %1485 = vmatprep.subr.mxu0 0.0
    %1486 = vmatpush1.msra.mxu0 %v1447
    %1487 = vmatprep.subr.mxu0 0.0
    %1488 = vmatpush1.msra.mxu0 0.0
    %1489 = vmatprep.subr.mxu0 0.0
    %1490 = vmatpush1.msra.mxu0 0.0
    %1491 = vmatprep.subr.mxu0 0.0
    %1492 = vmatpush1.msra.mxu0 0.0
    %1493 = vmatprep.subr.mxu0 0.0
    %1494 = vmatpush1.msra.mxu0 0.0
    %1495 = vmatprep.subr.mxu0 0.0
    %1496 = vmatpush1.msra.mxu0 0.0
    %1497 = vmatprep.subr.mxu0 0.0
    %1498 = vmatpush1.msra.mxu0 0.0
    %1499 = vmatprep.subr.mxu0 0.0
    %1500 = vmatpush1.msra.mxu0 0.0
    %1501 = vmatprep.subr.mxu0 0.0
    %1502 = vmatpush1.msra.mxu0 0.0
    %1503 = vmatprep.subr.mxu0 0.0
    %1504 = vmatpush1.msra.mxu0 0.0
    %1505 = vmatprep.subr.mxu0 0.0
    %1506 = vmatpush1.msra.mxu0 0.0
    %1507 = vmatprep.subr.mxu0 0.0
    %1508 = vmatpush1.msra.mxu0 0.0
    %1509 = vmatprep.subr.mxu0 0.0
    %1510 = vmatpush1.msra.mxu0 0.0
    %1511 = vmatprep.subr.mxu0 0.0
    %1512 = vmatpush1.msra.mxu0 0.0
    %1513 = vmatprep.subr.mxu0 0.0
    %1514 = vmatpush1.msra.mxu0 0.0
    %1515 = vmatprep.subr.mxu0 0.0
    %1516 = vmatpush1.msra.mxu0 0.0
    %1517 = vmatprep.subr.mxu0 0.0
    %1518 = vmatpush1.msra.mxu0 0.0
    %1519 = vmatprep.mubr.f32.mxu0 0.0
    %1520 = vmatmul.mubr.f32.gmra.mrb[0].mxu0 %v1448
    %v1521 = vpop.f32.mrb[0].mxu0
    %v1522 = vadd.f32 %v1453, %v1521
    %v1523 = vpop.f32.mrb[0].mxu0
    %1524 = vdwg.mxu0
    %1525 = vst [vmem:[#allocation2] sm:$0xff] %v1522
    // Predicated region
    $region30: #{tpu_custom_call.1} parent=1 // pred_check
      _
    $region31: #{tpu_custom_call.1} parent=1 // pred_check_branch
      %1527 = sbr.rel (0) target = $region33
    $region32: #{tpu_custom_call.1} parent=1 // pred_region
      %s1529 = ssub.s32 128, 128
      %1530 = vsyncadd [#allocation3], %s1529
      %s1532 = sshll.u32 [#allocation2], 4
      %s1533 = int_to_ptr.vmem [resolvable:$true] %s1532
      %1535 = dma.vmem_to_hbm [thread:$0]  %s1533, 128, %s7, [#allocation3]
    $region33: #{tpu_custom_call.1} parent=1 // pred_fallthru
      _
    // Predicated region
    $region34: #{tpu_custom_call.1} parent=1 // pred_check
      _
    $region35: #{tpu_custom_call.1} parent=1 // pred_check_branch
      %1537 = sbr.rel (0) target = $region37
    $region36: #{tpu_custom_call.1} parent=1 // pred_region
      %1538 = dma.done [#allocation3], 128
    $region37: #{tpu_custom_call.1} parent=1 // pred_fallthru
      _
    %1539 = vsyncpa [#allocation3], 1

</llo_original>
